<compile_context>
chip_gen: v5e
topology: v5e:2x2
jax: 0.10.0
libtpu: 0.0.40
codegen_flags: <defaults>
</compile_context>

<pallas_src>
import functools

import jax
import jax.numpy as jnp
from jax.experimental import pallas as pl
from jax.experimental.pallas import tpu as pltpu


# ----------------------------- glue (plain JAX) -----------------------------

def time_embedding(time, embedding_dim):
    """Positional encoding of time in [0, 1]; matches the PyTorch helper exactly."""
    half_dim = embedding_dim // 2
    emb = jnp.log(jnp.float32(10000.0)) / (half_dim - 1)
    emb = jnp.exp(jnp.arange(half_dim, dtype=jnp.float32) * -emb)
    emb = emb * time.astype(jnp.float32)                      # [B, half_dim] (broadcast)
    return jnp.concatenate([jnp.sin(emb), jnp.cos(emb)], axis=-1)


# ------------------------------- Pallas kernel -------------------------------

def _silu(x):
    return x * jax.nn.sigmoid(x)


def mlp_stack_kernel(x_ref, cond_ref,
                     w1c_ref, b1c_ref, w2c_ref, b2c_ref,
                     w1_ref, b1_ref, w2_ref, b2_ref,
                     out_ref, *, num_blocks):
    """Entire block stack in one invocation; block loop unrolled in the body."""
    f32 = jnp.float32
    bf16 = jnp.bfloat16

    x = x_ref[...].astype(f32)                       # [B, N] carried state (f32, in regs)
    cond = cond_ref[...].astype(bf16)                # [B, C] cast once for MXU

    # ---- conditioning pass: independent of the carried x, hoisted off the serial
    #      residual chain so only 2 matmuls/block remain on the dependency chain. ----
    scale1, shift, scale2 = [], [], []
    for i in range(num_blocks):
        h = jnp.dot(cond, w1c_ref[i], preferred_element_type=f32) + b1c_ref[i]
        h = _silu(h).astype(bf16)                    # [B, L]
        # Lane-aligned 3-way split: three separate [L, N] weights instead of one
        # [L, 3N] weight + non-128-aligned slicing of the result.
        scale1.append(jnp.dot(h, w2c_ref[i, 0], preferred_element_type=f32) + b2c_ref[i, 0])
        shift.append(jnp.dot(h, w2c_ref[i, 1], preferred_element_type=f32) + b2c_ref[i, 1])
        scale2.append(jnp.dot(h, w2c_ref[i, 2], preferred_element_type=f32) + b2c_ref[i, 2])

    inv_nb = 1.0 / num_blocks

    # ---- serial residual chain (unrolled; state carried in registers) ----
    for i in range(num_blocks):
        # F.layer_norm over last dim, no affine, eps = 1e-5 (f32)
        mean = jnp.mean(x, axis=-1, keepdims=True)
        var = jnp.mean((x - mean) ** 2, axis=-1, keepdims=True)
        xn = (x - mean) * jax.lax.rsqrt(var + 1e-5)

        y = (scale1[i] * xn + shift[i]).astype(bf16)
        h2 = jnp.dot(y, w1_ref[i], preferred_element_type=f32) + b1_ref[i]
        h2 = _silu(h2).astype(bf16)
        y2 = (jnp.dot(h2, w2_ref[i], preferred_element_type=f32) + b2_ref[i]) * scale2[i]

        x = y2 * inv_nb + x                          # residual update, f32

    out_ref[...] = x.astype(out_ref.dtype)


def mlp_stack_forward(x, time, z, params, num_blocks):
    # cond = z + time_embedding(time, z.size(1))   (cheap elementwise glue, plain JAX)
    cond = z + time_embedding(time, z.shape[1])

    B, noise_dim = x.shape
    kernel = functools.partial(mlp_stack_kernel, num_blocks=num_blocks)

    vmem = pl.BlockSpec(memory_space=pltpu.MemorySpace.VMEM)   # whole array, resident
    return pl.pallas_call(
        kernel,
        out_shape=jax.ShapeDtypeStruct((B, noise_dim), x.dtype),
        in_specs=[vmem] * 10,
        out_specs=vmem,
    )(x, cond,
      params["w1c"], params["b1c"], params["w2c"], params["b2c"],
      params["w1"], params["b1"], params["w2"], params["b2"])


# ---------------------------- params / reference ----------------------------

def init_params(key, noise_dim, cond_dim, latent_dim, num_blocks):
    ks = jax.random.split(key, 8)
    s = 0.05
    f32, bf16 = jnp.float32, jnp.bfloat16
    return {
        # Matmul weights in bf16 (MXU-native, half the DMA bytes); biases in f32.
        "w1c": (s * jax.random.normal(ks[0], (num_blocks, cond_dim, latent_dim), f32)).astype(bf16),
        "b1c": s * jax.random.normal(ks[1], (num_blocks, 1, latent_dim), f32),
        # Second conditioning linear stored as 3 lane-aligned [L, N] slabs
        # (== PyTorch's single [L, 3N] weight chunked along the output dim).
        "w2c": (s * jax.random.normal(ks[2], (num_blocks, 3, latent_dim, noise_dim), f32)).astype(bf16),
        "b2c": s * jax.random.normal(ks[3], (num_blocks, 3, 1, noise_dim), f32),
        "w1":  (s * jax.random.normal(ks[4], (num_blocks, noise_dim, latent_dim), f32)).astype(bf16),
        "b1":  s * jax.random.normal(ks[5], (num_blocks, 1, latent_dim), f32),
        "w2":  (s * jax.random.normal(ks[6], (num_blocks, latent_dim, noise_dim), f32)).astype(bf16),
        "b2":  s * jax.random.normal(ks[7], (num_blocks, 1, noise_dim), f32),
    }


def reference_forward(x, time, z, params, num_blocks):
    """Pure-JAX f32 reference mirroring the PyTorch forward (for correctness check)."""
    cond = z + time_embedding(time, z.shape[1])
    w1c = params["w1c"].astype(jnp.float32)
    w2c = params["w2c"].astype(jnp.float32)
    w1 = params["w1"].astype(jnp.float32)
    w2 = params["w2"].astype(jnp.float32)
    for i in range(num_blocks):
        residual = x
        mean = jnp.mean(x, axis=-1, keepdims=True)
        var = jnp.mean((x - mean) ** 2, axis=-1, keepdims=True)
        xn = (x - mean) / jnp.sqrt(var + 1e-5)
        h = jax.nn.silu(cond @ w1c[i] + params["b1c"][i][0])
        s1 = h @ w2c[i, 0] + params["b2c"][i, 0, 0]
        sh = h @ w2c[i, 1] + params["b2c"][i, 1, 0]
        s2 = h @ w2c[i, 2] + params["b2c"][i, 2, 0]
        h2 = jax.nn.silu((s1 * xn + sh) @ w1[i] + params["b1"][i][0])
        y = (h2 @ w2[i] + params["b2"][i][0]) * s2
        x = y / num_blocks + residual
    return x


# ----------------------------------- main ------------------------------------

if __name__ == "__main__":
    B = 8
    NOISE_DIM = 128      # noise_dimension   (lane-dense)
    COND_DIM = 128       # condition_dimension (must be even for time_embedding)
    LATENT_DIM = 128     # latent_dimension
    NUM_BLOCKS = 4       # num_blocks

    key = jax.random.PRNGKey(0)
    kx, kt, kz, kp = jax.random.split(key, 4)

    x = jax.random.normal(kx, (B, NOISE_DIM), jnp.float32)
    time = jax.random.uniform(kt, (B, 1), jnp.float32)       # diffusion time in [0, 1]
    z = jax.random.normal(kz, (B, COND_DIM), jnp.float32)    # class-conditioning vectors
    params = init_params(kp, NOISE_DIM, COND_DIM, LATENT_DIM, NUM_BLOCKS)

    out = jax.block_until_ready(mlp_stack_forward(x, time, z, params, NUM_BLOCKS))
    ref = jax.block_until_ready(reference_forward(x, time, z, params, NUM_BLOCKS))

    assert out.shape == (B, NOISE_DIM) and out.dtype == jnp.float32
    # bf16 weights/activation inputs to the MXU vs. f32 reference -> slightly looser tol
    assert jnp.allclose(out, ref, rtol=2e-2, atol=2e-2), "Pallas kernel mismatch vs reference"

    print("KERNEL_OK")
</pallas_src>

<mosaic_0001>
module attributes {stable_mosaic.version = 11 : i64} {
  func.func @mlp_stack_kernel(%arg0: memref<8x128xf32, #tpu.memory_space<vmem>>, %arg1: memref<8x128xf32, #tpu.memory_space<vmem>>, %arg2: memref<4x128x128xbf16, #tpu.memory_space<vmem>>, %arg3: memref<4x1x128xf32, #tpu.memory_space<vmem>>, %arg4: memref<4x3x128x128xbf16, #tpu.memory_space<vmem>>, %arg5: memref<4x3x1x128xf32, #tpu.memory_space<vmem>>, %arg6: memref<4x128x128xbf16, #tpu.memory_space<vmem>>, %arg7: memref<4x1x128xf32, #tpu.memory_space<vmem>>, %arg8: memref<4x128x128xbf16, #tpu.memory_space<vmem>>, %arg9: memref<4x1x128xf32, #tpu.memory_space<vmem>>, %arg10: memref<8x128xf32, #tpu.memory_space<vmem>>) attributes {dimension_semantics = [], scalar_prefetch = 0 : i64, scratch_operands = 0 : i64, tpu.core_type = #tpu.core_type<tc>} {
    %c0 = arith.constant 0 : index
    %c0_0 = arith.constant 0 : index
    %0 = vector.load %arg0[%c0, %c0_0] : memref<8x128xf32, #tpu.memory_space<vmem>>, vector<8x128xf32>
    %c0_1 = arith.constant 0 : index
    %c0_2 = arith.constant 0 : index
    %1 = vector.load %arg1[%c0_1, %c0_2] : memref<8x128xf32, #tpu.memory_space<vmem>>, vector<8x128xf32>
    %2 = arith.truncf %1 : vector<8x128xf32> to vector<8x128xbf16>
    %c0_3 = arith.constant 0 : index
    %c0_4 = arith.constant 0 : index
    %c0_5 = arith.constant 0 : index
    %3 = vector.load %arg2[%c0_3, %c0_4, %c0_5] : memref<4x128x128xbf16, #tpu.memory_space<vmem>>, vector<1x128x128xbf16>
    %4 = vector.shape_cast %3 : vector<1x128x128xbf16> to vector<128x128xbf16>
    %cst = arith.constant dense<0.000000e+00> : vector<8x128xf32>
    %5 = tpu.matmul %2, %4, %cst {dimension_numbers = #tpu.dot_dimension_numbers<[1], [0], [0], [1], [0, 0, 1, 1], [], []>} : vector<8x128xbf16>, vector<128x128xbf16>, vector<8x128xf32> -> vector<8x128xf32>
    %c0_6 = arith.constant 0 : index
    %c0_7 = arith.constant 0 : index
    %c0_8 = arith.constant 0 : index
    %6 = vector.load %arg3[%c0_6, %c0_7, %c0_8] : memref<4x1x128xf32, #tpu.memory_space<vmem>>, vector<1x1x128xf32>
    %7 = vector.shape_cast %6 : vector<1x1x128xf32> to vector<1x128xf32>
    %8 = vector.broadcast %7 : vector<1x128xf32> to vector<8x128xf32>
    %9 = arith.addf %5, %8 : vector<8x128xf32>
    %10 = arith.negf %9 : vector<8x128xf32>
    %11 = math.exp %10 : vector<8x128xf32>
    %cst_9 = arith.constant 1.000000e+00 : f32
    %12 = vector.broadcast %cst_9 : f32 to vector<8x128xf32>
    %13 = arith.addf %12, %11 : vector<8x128xf32>
    %14 = arith.divf %12, %13 : vector<8x128xf32>
    %15 = arith.mulf %9, %14 : vector<8x128xf32>
    %16 = arith.truncf %15 : vector<8x128xf32> to vector<8x128xbf16>
    %c0_10 = arith.constant 0 : index
    %c0_11 = arith.constant 0 : index
    %c0_12 = arith.constant 0 : index
    %c0_13 = arith.constant 0 : index
    %17 = vector.load %arg4[%c0_10, %c0_11, %c0_12, %c0_13] : memref<4x3x128x128xbf16, #tpu.memory_space<vmem>>, vector<1x1x128x128xbf16>
    %18 = vector.shape_cast %17 : vector<1x1x128x128xbf16> to vector<128x128xbf16>
    %cst_14 = arith.constant dense<0.000000e+00> : vector<8x128xf32>
    %19 = tpu.matmul %16, %18, %cst_14 {dimension_numbers = #tpu.dot_dimension_numbers<[1], [0], [0], [1], [0, 0, 1, 1], [], []>} : vector<8x128xbf16>, vector<128x128xbf16>, vector<8x128xf32> -> vector<8x128xf32>
    %c0_15 = arith.constant 0 : index
    %c0_16 = arith.constant 0 : index
    %c0_17 = arith.constant 0 : index
    %c0_18 = arith.constant 0 : index
    %20 = vector.load %arg5[%c0_15, %c0_16, %c0_17, %c0_18] : memref<4x3x1x128xf32, #tpu.memory_space<vmem>>, vector<1x1x1x128xf32>
    %21 = vector.shape_cast %20 : vector<1x1x1x128xf32> to vector<1x128xf32>
    %22 = vector.broadcast %21 : vector<1x128xf32> to vector<8x128xf32>
    %23 = arith.addf %19, %22 : vector<8x128xf32>
    %c0_19 = arith.constant 0 : index
    %c1 = arith.constant 1 : index
    %c0_20 = arith.constant 0 : index
    %c0_21 = arith.constant 0 : index
    %24 = vector.load %arg4[%c0_19, %c1, %c0_20, %c0_21] : memref<4x3x128x128xbf16, #tpu.memory_space<vmem>>, vector<1x1x128x128xbf16>
    %25 = vector.shape_cast %24 : vector<1x1x128x128xbf16> to vector<128x128xbf16>
    %cst_22 = arith.constant dense<0.000000e+00> : vector<8x128xf32>
    %26 = tpu.matmul %16, %25, %cst_22 {dimension_numbers = #tpu.dot_dimension_numbers<[1], [0], [0], [1], [0, 0, 1, 1], [], []>} : vector<8x128xbf16>, vector<128x128xbf16>, vector<8x128xf32> -> vector<8x128xf32>
    %c0_23 = arith.constant 0 : index
    %c1_24 = arith.constant 1 : index
    %c0_25 = arith.constant 0 : index
    %c0_26 = arith.constant 0 : index
    %27 = vector.load %arg5[%c0_23, %c1_24, %c0_25, %c0_26] : memref<4x3x1x128xf32, #tpu.memory_space<vmem>>, vector<1x1x1x128xf32>
    %28 = vector.shape_cast %27 : vector<1x1x1x128xf32> to vector<1x128xf32>
    %29 = vector.broadcast %28 : vector<1x128xf32> to vector<8x128xf32>
    %30 = arith.addf %26, %29 : vector<8x128xf32>
    %c0_27 = arith.constant 0 : index
    %c2 = arith.constant 2 : index
    %c0_28 = arith.constant 0 : index
    %c0_29 = arith.constant 0 : index
    %31 = vector.load %arg4[%c0_27, %c2, %c0_28, %c0_29] : memref<4x3x128x128xbf16, #tpu.memory_space<vmem>>, vector<1x1x128x128xbf16>
    %32 = vector.shape_cast %31 : vector<1x1x128x128xbf16> to vector<128x128xbf16>
    %cst_30 = arith.constant dense<0.000000e+00> : vector<8x128xf32>
    %33 = tpu.matmul %16, %32, %cst_30 {dimension_numbers = #tpu.dot_dimension_numbers<[1], [0], [0], [1], [0, 0, 1, 1], [], []>} : vector<8x128xbf16>, vector<128x128xbf16>, vector<8x128xf32> -> vector<8x128xf32>
    %c0_31 = arith.constant 0 : index
    %c2_32 = arith.constant 2 : index
    %c0_33 = arith.constant 0 : index
    %c0_34 = arith.constant 0 : index
    %34 = vector.load %arg5[%c0_31, %c2_32, %c0_33, %c0_34] : memref<4x3x1x128xf32, #tpu.memory_space<vmem>>, vector<1x1x1x128xf32>
    %35 = vector.shape_cast %34 : vector<1x1x1x128xf32> to vector<1x128xf32>
    %36 = vector.broadcast %35 : vector<1x128xf32> to vector<8x128xf32>
    %37 = arith.addf %33, %36 : vector<8x128xf32>
    %c1_35 = arith.constant 1 : index
    %c0_36 = arith.constant 0 : index
    %c0_37 = arith.constant 0 : index
    %38 = vector.load %arg2[%c1_35, %c0_36, %c0_37] : memref<4x128x128xbf16, #tpu.memory_space<vmem>>, vector<1x128x128xbf16>
    %39 = vector.shape_cast %38 : vector<1x128x128xbf16> to vector<128x128xbf16>
    %cst_38 = arith.constant dense<0.000000e+00> : vector<8x128xf32>
    %40 = tpu.matmul %2, %39, %cst_38 {dimension_numbers = #tpu.dot_dimension_numbers<[1], [0], [0], [1], [0, 0, 1, 1], [], []>} : vector<8x128xbf16>, vector<128x128xbf16>, vector<8x128xf32> -> vector<8x128xf32>
    %c1_39 = arith.constant 1 : index
    %c0_40 = arith.constant 0 : index
    %c0_41 = arith.constant 0 : index
    %41 = vector.load %arg3[%c1_39, %c0_40, %c0_41] : memref<4x1x128xf32, #tpu.memory_space<vmem>>, vector<1x1x128xf32>
    %42 = vector.shape_cast %41 : vector<1x1x128xf32> to vector<1x128xf32>
    %43 = vector.broadcast %42 : vector<1x128xf32> to vector<8x128xf32>
    %44 = arith.addf %40, %43 : vector<8x128xf32>
    %45 = arith.negf %44 : vector<8x128xf32>
    %46 = math.exp %45 : vector<8x128xf32>
    %cst_42 = arith.constant 1.000000e+00 : f32
    %47 = vector.broadcast %cst_42 : f32 to vector<8x128xf32>
    %48 = arith.addf %47, %46 : vector<8x128xf32>
    %49 = arith.divf %47, %48 : vector<8x128xf32>
    %50 = arith.mulf %44, %49 : vector<8x128xf32>
    %51 = arith.truncf %50 : vector<8x128xf32> to vector<8x128xbf16>
    %c1_43 = arith.constant 1 : index
    %c0_44 = arith.constant 0 : index
    %c0_45 = arith.constant 0 : index
    %c0_46 = arith.constant 0 : index
    %52 = vector.load %arg4[%c1_43, %c0_44, %c0_45, %c0_46] : memref<4x3x128x128xbf16, #tpu.memory_space<vmem>>, vector<1x1x128x128xbf16>
    %53 = vector.shape_cast %52 : vector<1x1x128x128xbf16> to vector<128x128xbf16>
    %cst_47 = arith.constant dense<0.000000e+00> : vector<8x128xf32>
    %54 = tpu.matmul %51, %53, %cst_47 {dimension_numbers = #tpu.dot_dimension_numbers<[1], [0], [0], [1], [0, 0, 1, 1], [], []>} : vector<8x128xbf16>, vector<128x128xbf16>, vector<8x128xf32> -> vector<8x128xf32>
    %c1_48 = arith.constant 1 : index
    %c0_49 = arith.constant 0 : index
    %c0_50 = arith.constant 0 : index
    %c0_51 = arith.constant 0 : index
    %55 = vector.load %arg5[%c1_48, %c0_49, %c0_50, %c0_51] : memref<4x3x1x128xf32, #tpu.memory_space<vmem>>, vector<1x1x1x128xf32>
    %56 = vector.shape_cast %55 : vector<1x1x1x128xf32> to vector<1x128xf32>
    %57 = vector.broadcast %56 : vector<1x128xf32> to vector<8x128xf32>
    %58 = arith.addf %54, %57 : vector<8x128xf32>
    %c1_52 = arith.constant 1 : index
    %c1_53 = arith.constant 1 : index
    %c0_54 = arith.constant 0 : index
    %c0_55 = arith.constant 0 : index
    %59 = vector.load %arg4[%c1_52, %c1_53, %c0_54, %c0_55] : memref<4x3x128x128xbf16, #tpu.memory_space<vmem>>, vector<1x1x128x128xbf16>
    %60 = vector.shape_cast %59 : vector<1x1x128x128xbf16> to vector<128x128xbf16>
    %cst_56 = arith.constant dense<0.000000e+00> : vector<8x128xf32>
    %61 = tpu.matmul %51, %60, %cst_56 {dimension_numbers = #tpu.dot_dimension_numbers<[1], [0], [0], [1], [0, 0, 1, 1], [], []>} : vector<8x128xbf16>, vector<128x128xbf16>, vector<8x128xf32> -> vector<8x128xf32>
    %c1_57 = arith.constant 1 : index
    %c1_58 = arith.constant 1 : index
    %c0_59 = arith.constant 0 : index
    %c0_60 = arith.constant 0 : index
    %62 = vector.load %arg5[%c1_57, %c1_58, %c0_59, %c0_60] : memref<4x3x1x128xf32, #tpu.memory_space<vmem>>, vector<1x1x1x128xf32>
    %63 = vector.shape_cast %62 : vector<1x1x1x128xf32> to vector<1x128xf32>
    %64 = vector.broadcast %63 : vector<1x128xf32> to vector<8x128xf32>
    %65 = arith.addf %61, %64 : vector<8x128xf32>
    %c1_61 = arith.constant 1 : index
    %c2_62 = arith.constant 2 : index
    %c0_63 = arith.constant 0 : index
    %c0_64 = arith.constant 0 : index
    %66 = vector.load %arg4[%c1_61, %c2_62, %c0_63, %c0_64] : memref<4x3x128x128xbf16, #tpu.memory_space<vmem>>, vector<1x1x128x128xbf16>
    %67 = vector.shape_cast %66 : vector<1x1x128x128xbf16> to vector<128x128xbf16>
    %cst_65 = arith.constant dense<0.000000e+00> : vector<8x128xf32>
    %68 = tpu.matmul %51, %67, %cst_65 {dimension_numbers = #tpu.dot_dimension_numbers<[1], [0], [0], [1], [0, 0, 1, 1], [], []>} : vector<8x128xbf16>, vector<128x128xbf16>, vector<8x128xf32> -> vector<8x128xf32>
    %c1_66 = arith.constant 1 : index
    %c2_67 = arith.constant 2 : index
    %c0_68 = arith.constant 0 : index
    %c0_69 = arith.constant 0 : index
    %69 = vector.load %arg5[%c1_66, %c2_67, %c0_68, %c0_69] : memref<4x3x1x128xf32, #tpu.memory_space<vmem>>, vector<1x1x1x128xf32>
    %70 = vector.shape_cast %69 : vector<1x1x1x128xf32> to vector<1x128xf32>
    %71 = vector.broadcast %70 : vector<1x128xf32> to vector<8x128xf32>
    %72 = arith.addf %68, %71 : vector<8x128xf32>
    %c2_70 = arith.constant 2 : index
    %c0_71 = arith.constant 0 : index
    %c0_72 = arith.constant 0 : index
    %73 = vector.load %arg2[%c2_70, %c0_71, %c0_72] : memref<4x128x128xbf16, #tpu.memory_space<vmem>>, vector<1x128x128xbf16>
    %74 = vector.shape_cast %73 : vector<1x128x128xbf16> to vector<128x128xbf16>
    %cst_73 = arith.constant dense<0.000000e+00> : vector<8x128xf32>
    %75 = tpu.matmul %2, %74, %cst_73 {dimension_numbers = #tpu.dot_dimension_numbers<[1], [0], [0], [1], [0, 0, 1, 1], [], []>} : vector<8x128xbf16>, vector<128x128xbf16>, vector<8x128xf32> -> vector<8x128xf32>
    %c2_74 = arith.constant 2 : index
    %c0_75 = arith.constant 0 : index
    %c0_76 = arith.constant 0 : index
    %76 = vector.load %arg3[%c2_74, %c0_75, %c0_76] : memref<4x1x128xf32, #tpu.memory_space<vmem>>, vector<1x1x128xf32>
    %77 = vector.shape_cast %76 : vector<1x1x128xf32> to vector<1x128xf32>
    %78 = vector.broadcast %77 : vector<1x128xf32> to vector<8x128xf32>
    %79 = arith.addf %75, %78 : vector<8x128xf32>
    %80 = arith.negf %79 : vector<8x128xf32>
    %81 = math.exp %80 : vector<8x128xf32>
    %cst_77 = arith.constant 1.000000e+00 : f32
    %82 = vector.broadcast %cst_77 : f32 to vector<8x128xf32>
    %83 = arith.addf %82, %81 : vector<8x128xf32>
    %84 = arith.divf %82, %83 : vector<8x128xf32>
    %85 = arith.mulf %79, %84 : vector<8x128xf32>
    %86 = arith.truncf %85 : vector<8x128xf32> to vector<8x128xbf16>
    %c2_78 = arith.constant 2 : index
    %c0_79 = arith.constant 0 : index
    %c0_80 = arith.constant 0 : index
    %c0_81 = arith.constant 0 : index
    %87 = vector.load %arg4[%c2_78, %c0_79, %c0_80, %c0_81] : memref<4x3x128x128xbf16, #tpu.memory_space<vmem>>, vector<1x1x128x128xbf16>
    %88 = vector.shape_cast %87 : vector<1x1x128x128xbf16> to vector<128x128xbf16>
    %cst_82 = arith.constant dense<0.000000e+00> : vector<8x128xf32>
    %89 = tpu.matmul %86, %88, %cst_82 {dimension_numbers = #tpu.dot_dimension_numbers<[1], [0], [0], [1], [0, 0, 1, 1], [], []>} : vector<8x128xbf16>, vector<128x128xbf16>, vector<8x128xf32> -> vector<8x128xf32>
    %c2_83 = arith.constant 2 : index
    %c0_84 = arith.constant 0 : index
    %c0_85 = arith.constant 0 : index
    %c0_86 = arith.constant 0 : index
    %90 = vector.load %arg5[%c2_83, %c0_84, %c0_85, %c0_86] : memref<4x3x1x128xf32, #tpu.memory_space<vmem>>, vector<1x1x1x128xf32>
    %91 = vector.shape_cast %90 : vector<1x1x1x128xf32> to vector<1x128xf32>
    %92 = vector.broadcast %91 : vector<1x128xf32> to vector<8x128xf32>
    %93 = arith.addf %89, %92 : vector<8x128xf32>
    %c2_87 = arith.constant 2 : index
    %c1_88 = arith.constant 1 : index
    %c0_89 = arith.constant 0 : index
    %c0_90 = arith.constant 0 : index
    %94 = vector.load %arg4[%c2_87, %c1_88, %c0_89, %c0_90] : memref<4x3x128x128xbf16, #tpu.memory_space<vmem>>, vector<1x1x128x128xbf16>
    %95 = vector.shape_cast %94 : vector<1x1x128x128xbf16> to vector<128x128xbf16>
    %cst_91 = arith.constant dense<0.000000e+00> : vector<8x128xf32>
    %96 = tpu.matmul %86, %95, %cst_91 {dimension_numbers = #tpu.dot_dimension_numbers<[1], [0], [0], [1], [0, 0, 1, 1], [], []>} : vector<8x128xbf16>, vector<128x128xbf16>, vector<8x128xf32> -> vector<8x128xf32>
    %c2_92 = arith.constant 2 : index
    %c1_93 = arith.constant 1 : index
    %c0_94 = arith.constant 0 : index
    %c0_95 = arith.constant 0 : index
    %97 = vector.load %arg5[%c2_92, %c1_93, %c0_94, %c0_95] : memref<4x3x1x128xf32, #tpu.memory_space<vmem>>, vector<1x1x1x128xf32>
    %98 = vector.shape_cast %97 : vector<1x1x1x128xf32> to vector<1x128xf32>
    %99 = vector.broadcast %98 : vector<1x128xf32> to vector<8x128xf32>
    %100 = arith.addf %96, %99 : vector<8x128xf32>
    %c2_96 = arith.constant 2 : index
    %c2_97 = arith.constant 2 : index
    %c0_98 = arith.constant 0 : index
    %c0_99 = arith.constant 0 : index
    %101 = vector.load %arg4[%c2_96, %c2_97, %c0_98, %c0_99] : memref<4x3x128x128xbf16, #tpu.memory_space<vmem>>, vector<1x1x128x128xbf16>
    %102 = vector.shape_cast %101 : vector<1x1x128x128xbf16> to vector<128x128xbf16>
    %cst_100 = arith.constant dense<0.000000e+00> : vector<8x128xf32>
    %103 = tpu.matmul %86, %102, %cst_100 {dimension_numbers = #tpu.dot_dimension_numbers<[1], [0], [0], [1], [0, 0, 1, 1], [], []>} : vector<8x128xbf16>, vector<128x128xbf16>, vector<8x128xf32> -> vector<8x128xf32>
    %c2_101 = arith.constant 2 : index
    %c2_102 = arith.constant 2 : index
    %c0_103 = arith.constant 0 : index
    %c0_104 = arith.constant 0 : index
    %104 = vector.load %arg5[%c2_101, %c2_102, %c0_103, %c0_104] : memref<4x3x1x128xf32, #tpu.memory_space<vmem>>, vector<1x1x1x128xf32>
    %105 = vector.shape_cast %104 : vector<1x1x1x128xf32> to vector<1x128xf32>
    %106 = vector.broadcast %105 : vector<1x128xf32> to vector<8x128xf32>
    %107 = arith.addf %103, %106 : vector<8x128xf32>
    %c3 = arith.constant 3 : index
    %c0_105 = arith.constant 0 : index
    %c0_106 = arith.constant 0 : index
    %108 = vector.load %arg2[%c3, %c0_105, %c0_106] : memref<4x128x128xbf16, #tpu.memory_space<vmem>>, vector<1x128x128xbf16>
    %109 = vector.shape_cast %108 : vector<1x128x128xbf16> to vector<128x128xbf16>
    %cst_107 = arith.constant dense<0.000000e+00> : vector<8x128xf32>
    %110 = tpu.matmul %2, %109, %cst_107 {dimension_numbers = #tpu.dot_dimension_numbers<[1], [0], [0], [1], [0, 0, 1, 1], [], []>} : vector<8x128xbf16>, vector<128x128xbf16>, vector<8x128xf32> -> vector<8x128xf32>
    %c3_108 = arith.constant 3 : index
    %c0_109 = arith.constant 0 : index
    %c0_110 = arith.constant 0 : index
    %111 = vector.load %arg3[%c3_108, %c0_109, %c0_110] : memref<4x1x128xf32, #tpu.memory_space<vmem>>, vector<1x1x128xf32>
    %112 = vector.shape_cast %111 : vector<1x1x128xf32> to vector<1x128xf32>
    %113 = vector.broadcast %112 : vector<1x128xf32> to vector<8x128xf32>
    %114 = arith.addf %110, %113 : vector<8x128xf32>
    %115 = arith.negf %114 : vector<8x128xf32>
    %116 = math.exp %115 : vector<8x128xf32>
    %cst_111 = arith.constant 1.000000e+00 : f32
    %117 = vector.broadcast %cst_111 : f32 to vector<8x128xf32>
    %118 = arith.addf %117, %116 : vector<8x128xf32>
    %119 = arith.divf %117, %118 : vector<8x128xf32>
    %120 = arith.mulf %114, %119 : vector<8x128xf32>
    %121 = arith.truncf %120 : vector<8x128xf32> to vector<8x128xbf16>
    %c3_112 = arith.constant 3 : index
    %c0_113 = arith.constant 0 : index
    %c0_114 = arith.constant 0 : index
    %c0_115 = arith.constant 0 : index
    %122 = vector.load %arg4[%c3_112, %c0_113, %c0_114, %c0_115] : memref<4x3x128x128xbf16, #tpu.memory_space<vmem>>, vector<1x1x128x128xbf16>
    %123 = vector.shape_cast %122 : vector<1x1x128x128xbf16> to vector<128x128xbf16>
    %cst_116 = arith.constant dense<0.000000e+00> : vector<8x128xf32>
    %124 = tpu.matmul %121, %123, %cst_116 {dimension_numbers = #tpu.dot_dimension_numbers<[1], [0], [0], [1], [0, 0, 1, 1], [], []>} : vector<8x128xbf16>, vector<128x128xbf16>, vector<8x128xf32> -> vector<8x128xf32>
    %c3_117 = arith.constant 3 : index
    %c0_118 = arith.constant 0 : index
    %c0_119 = arith.constant 0 : index
    %c0_120 = arith.constant 0 : index
    %125 = vector.load %arg5[%c3_117, %c0_118, %c0_119, %c0_120] : memref<4x3x1x128xf32, #tpu.memory_space<vmem>>, vector<1x1x1x128xf32>
    %126 = vector.shape_cast %125 : vector<1x1x1x128xf32> to vector<1x128xf32>
    %127 = vector.broadcast %126 : vector<1x128xf32> to vector<8x128xf32>
    %128 = arith.addf %124, %127 : vector<8x128xf32>
    %c3_121 = arith.constant 3 : index
    %c1_122 = arith.constant 1 : index
    %c0_123 = arith.constant 0 : index
    %c0_124 = arith.constant 0 : index
    %129 = vector.load %arg4[%c3_121, %c1_122, %c0_123, %c0_124] : memref<4x3x128x128xbf16, #tpu.memory_space<vmem>>, vector<1x1x128x128xbf16>
    %130 = vector.shape_cast %129 : vector<1x1x128x128xbf16> to vector<128x128xbf16>
    %cst_125 = arith.constant dense<0.000000e+00> : vector<8x128xf32>
    %131 = tpu.matmul %121, %130, %cst_125 {dimension_numbers = #tpu.dot_dimension_numbers<[1], [0], [0], [1], [0, 0, 1, 1], [], []>} : vector<8x128xbf16>, vector<128x128xbf16>, vector<8x128xf32> -> vector<8x128xf32>
    %c3_126 = arith.constant 3 : index
    %c1_127 = arith.constant 1 : index
    %c0_128 = arith.constant 0 : index
    %c0_129 = arith.constant 0 : index
    %132 = vector.load %arg5[%c3_126, %c1_127, %c0_128, %c0_129] : memref<4x3x1x128xf32, #tpu.memory_space<vmem>>, vector<1x1x1x128xf32>
    %133 = vector.shape_cast %132 : vector<1x1x1x128xf32> to vector<1x128xf32>
    %134 = vector.broadcast %133 : vector<1x128xf32> to vector<8x128xf32>
    %135 = arith.addf %131, %134 : vector<8x128xf32>
    %c3_130 = arith.constant 3 : index
    %c2_131 = arith.constant 2 : index
    %c0_132 = arith.constant 0 : index
    %c0_133 = arith.constant 0 : index
    %136 = vector.load %arg4[%c3_130, %c2_131, %c0_132, %c0_133] : memref<4x3x128x128xbf16, #tpu.memory_space<vmem>>, vector<1x1x128x128xbf16>
    %137 = vector.shape_cast %136 : vector<1x1x128x128xbf16> to vector<128x128xbf16>
    %cst_134 = arith.constant dense<0.000000e+00> : vector<8x128xf32>
    %138 = tpu.matmul %121, %137, %cst_134 {dimension_numbers = #tpu.dot_dimension_numbers<[1], [0], [0], [1], [0, 0, 1, 1], [], []>} : vector<8x128xbf16>, vector<128x128xbf16>, vector<8x128xf32> -> vector<8x128xf32>
    %c3_135 = arith.constant 3 : index
    %c2_136 = arith.constant 2 : index
    %c0_137 = arith.constant 0 : index
    %c0_138 = arith.constant 0 : index
    %139 = vector.load %arg5[%c3_135, %c2_136, %c0_137, %c0_138] : memref<4x3x1x128xf32, #tpu.memory_space<vmem>>, vector<1x1x1x128xf32>
    %140 = vector.shape_cast %139 : vector<1x1x1x128xf32> to vector<1x128xf32>
    %141 = vector.broadcast %140 : vector<1x128xf32> to vector<8x128xf32>
    %142 = arith.addf %138, %141 : vector<8x128xf32>
    %cst_139 = arith.constant dense<0.000000e+00> : vector<8xf32>
    %143 = vector.multi_reduction <add>, %0, %cst_139 [1] : vector<8x128xf32> to vector<8xf32>
    %144 = vector.shape_cast %143 : vector<8xf32> to vector<8x1xf32>
    %cst_140 = arith.constant 1.280000e+02 : f32
    %145 = vector.broadcast %cst_140 : f32 to vector<8x1xf32>
    %146 = arith.divf %144, %145 : vector<8x1xf32>
    %147 = vector.broadcast %146 : vector<8x1xf32> to vector<8x128xf32>
    %148 = arith.subf %0, %147 : vector<8x128xf32>
    %149 = arith.mulf %148, %148 : vector<8x128xf32>
    %cst_141 = arith.constant dense<0.000000e+00> : vector<8xf32>
    %150 = vector.multi_reduction <add>, %149, %cst_141 [1] : vector<8x128xf32> to vector<8xf32>
    %151 = vector.shape_cast %150 : vector<8xf32> to vector<8x1xf32>
    %cst_142 = arith.constant 1.280000e+02 : f32
    %152 = vector.broadcast %cst_142 : f32 to vector<8x1xf32>
    %153 = arith.divf %151, %152 : vector<8x1xf32>
    %154 = vector.broadcast %146 : vector<8x1xf32> to vector<8x128xf32>
    %155 = arith.subf %0, %154 : vector<8x128xf32>
    %cst_143 = arith.constant 9.99999974E-6 : f32
    %156 = vector.broadcast %cst_143 : f32 to vector<8x1xf32>
    %157 = arith.addf %153, %156 : vector<8x1xf32>
    %158 = math.rsqrt %157 : vector<8x1xf32>
    %159 = vector.broadcast %158 : vector<8x1xf32> to vector<8x128xf32>
    %160 = arith.mulf %155, %159 : vector<8x128xf32>
    %161 = arith.mulf %23, %160 : vector<8x128xf32>
    %162 = arith.addf %161, %30 : vector<8x128xf32>
    %163 = arith.truncf %162 : vector<8x128xf32> to vector<8x128xbf16>
    %c0_144 = arith.constant 0 : index
    %c0_145 = arith.constant 0 : index
    %c0_146 = arith.constant 0 : index
    %164 = vector.load %arg6[%c0_144, %c0_145, %c0_146] : memref<4x128x128xbf16, #tpu.memory_space<vmem>>, vector<1x128x128xbf16>
    %165 = vector.shape_cast %164 : vector<1x128x128xbf16> to vector<128x128xbf16>
    %cst_147 = arith.constant dense<0.000000e+00> : vector<8x128xf32>
    %166 = tpu.matmul %163, %165, %cst_147 {dimension_numbers = #tpu.dot_dimension_numbers<[1], [0], [0], [1], [0, 0, 1, 1], [], []>} : vector<8x128xbf16>, vector<128x128xbf16>, vector<8x128xf32> -> vector<8x128xf32>
    %c0_148 = arith.constant 0 : index
    %c0_149 = arith.constant 0 : index
    %c0_150 = arith.constant 0 : index
    %167 = vector.load %arg7[%c0_148, %c0_149, %c0_150] : memref<4x1x128xf32, #tpu.memory_space<vmem>>, vector<1x1x128xf32>
    %168 = vector.shape_cast %167 : vector<1x1x128xf32> to vector<1x128xf32>
    %169 = vector.broadcast %168 : vector<1x128xf32> to vector<8x128xf32>
    %170 = arith.addf %166, %169 : vector<8x128xf32>
    %171 = arith.negf %170 : vector<8x128xf32>
    %172 = math.exp %171 : vector<8x128xf32>
    %cst_151 = arith.constant 1.000000e+00 : f32
    %173 = vector.broadcast %cst_151 : f32 to vector<8x128xf32>
    %174 = arith.addf %173, %172 : vector<8x128xf32>
    %175 = arith.divf %173, %174 : vector<8x128xf32>
    %176 = arith.mulf %170, %175 : vector<8x128xf32>
    %177 = arith.truncf %176 : vector<8x128xf32> to vector<8x128xbf16>
    %c0_152 = arith.constant 0 : index
    %c0_153 = arith.constant 0 : index
    %c0_154 = arith.constant 0 : index
    %178 = vector.load %arg8[%c0_152, %c0_153, %c0_154] : memref<4x128x128xbf16, #tpu.memory_space<vmem>>, vector<1x128x128xbf16>
    %179 = vector.shape_cast %178 : vector<1x128x128xbf16> to vector<128x128xbf16>
    %cst_155 = arith.constant dense<0.000000e+00> : vector<8x128xf32>
    %180 = tpu.matmul %177, %179, %cst_155 {dimension_numbers = #tpu.dot_dimension_numbers<[1], [0], [0], [1], [0, 0, 1, 1], [], []>} : vector<8x128xbf16>, vector<128x128xbf16>, vector<8x128xf32> -> vector<8x128xf32>
    %c0_156 = arith.constant 0 : index
    %c0_157 = arith.constant 0 : index
    %c0_158 = arith.constant 0 : index
    %181 = vector.load %arg9[%c0_156, %c0_157, %c0_158] : memref<4x1x128xf32, #tpu.memory_space<vmem>>, vector<1x1x128xf32>
    %182 = vector.shape_cast %181 : vector<1x1x128xf32> to vector<1x128xf32>
    %183 = vector.broadcast %182 : vector<1x128xf32> to vector<8x128xf32>
    %184 = arith.addf %180, %183 : vector<8x128xf32>
    %185 = arith.mulf %184, %37 : vector<8x128xf32>
    %cst_159 = arith.constant 2.500000e-01 : f32
    %186 = vector.broadcast %cst_159 : f32 to vector<8x128xf32>
    %187 = arith.mulf %185, %186 : vector<8x128xf32>
    %188 = arith.addf %187, %0 : vector<8x128xf32>
    %cst_160 = arith.constant dense<0.000000e+00> : vector<8xf32>
    %189 = vector.multi_reduction <add>, %188, %cst_160 [1] : vector<8x128xf32> to vector<8xf32>
    %190 = vector.shape_cast %189 : vector<8xf32> to vector<8x1xf32>
    %cst_161 = arith.constant 1.280000e+02 : f32
    %191 = vector.broadcast %cst_161 : f32 to vector<8x1xf32>
    %192 = arith.divf %190, %191 : vector<8x1xf32>
    %193 = vector.broadcast %192 : vector<8x1xf32> to vector<8x128xf32>
    %194 = arith.subf %188, %193 : vector<8x128xf32>
    %195 = arith.mulf %194, %194 : vector<8x128xf32>
    %cst_162 = arith.constant dense<0.000000e+00> : vector<8xf32>
    %196 = vector.multi_reduction <add>, %195, %cst_162 [1] : vector<8x128xf32> to vector<8xf32>
    %197 = vector.shape_cast %196 : vector<8xf32> to vector<8x1xf32>
    %cst_163 = arith.constant 1.280000e+02 : f32
    %198 = vector.broadcast %cst_163 : f32 to vector<8x1xf32>
    %199 = arith.divf %197, %198 : vector<8x1xf32>
    %200 = vector.broadcast %192 : vector<8x1xf32> to vector<8x128xf32>
    %201 = arith.subf %188, %200 : vector<8x128xf32>
    %cst_164 = arith.constant 9.99999974E-6 : f32
    %202 = vector.broadcast %cst_164 : f32 to vector<8x1xf32>
    %203 = arith.addf %199, %202 : vector<8x1xf32>
    %204 = math.rsqrt %203 : vector<8x1xf32>
    %205 = vector.broadcast %204 : vector<8x1xf32> to vector<8x128xf32>
    %206 = arith.mulf %201, %205 : vector<8x128xf32>
    %207 = arith.mulf %58, %206 : vector<8x128xf32>
    %208 = arith.addf %207, %65 : vector<8x128xf32>
    %209 = arith.truncf %208 : vector<8x128xf32> to vector<8x128xbf16>
    %c1_165 = arith.constant 1 : index
    %c0_166 = arith.constant 0 : index
    %c0_167 = arith.constant 0 : index
    %210 = vector.load %arg6[%c1_165, %c0_166, %c0_167] : memref<4x128x128xbf16, #tpu.memory_space<vmem>>, vector<1x128x128xbf16>
    %211 = vector.shape_cast %210 : vector<1x128x128xbf16> to vector<128x128xbf16>
    %cst_168 = arith.constant dense<0.000000e+00> : vector<8x128xf32>
    %212 = tpu.matmul %209, %211, %cst_168 {dimension_numbers = #tpu.dot_dimension_numbers<[1], [0], [0], [1], [0, 0, 1, 1], [], []>} : vector<8x128xbf16>, vector<128x128xbf16>, vector<8x128xf32> -> vector<8x128xf32>
    %c1_169 = arith.constant 1 : index
    %c0_170 = arith.constant 0 : index
    %c0_171 = arith.constant 0 : index
    %213 = vector.load %arg7[%c1_169, %c0_170, %c0_171] : memref<4x1x128xf32, #tpu.memory_space<vmem>>, vector<1x1x128xf32>
    %214 = vector.shape_cast %213 : vector<1x1x128xf32> to vector<1x128xf32>
    %215 = vector.broadcast %214 : vector<1x128xf32> to vector<8x128xf32>
    %216 = arith.addf %212, %215 : vector<8x128xf32>
    %217 = arith.negf %216 : vector<8x128xf32>
    %218 = math.exp %217 : vector<8x128xf32>
    %cst_172 = arith.constant 1.000000e+00 : f32
    %219 = vector.broadcast %cst_172 : f32 to vector<8x128xf32>
    %220 = arith.addf %219, %218 : vector<8x128xf32>
    %221 = arith.divf %219, %220 : vector<8x128xf32>
    %222 = arith.mulf %216, %221 : vector<8x128xf32>
    %223 = arith.truncf %222 : vector<8x128xf32> to vector<8x128xbf16>
    %c1_173 = arith.constant 1 : index
    %c0_174 = arith.constant 0 : index
    %c0_175 = arith.constant 0 : index
    %224 = vector.load %arg8[%c1_173, %c0_174, %c0_175] : memref<4x128x128xbf16, #tpu.memory_space<vmem>>, vector<1x128x128xbf16>
    %225 = vector.shape_cast %224 : vector<1x128x128xbf16> to vector<128x128xbf16>
    %cst_176 = arith.constant dense<0.000000e+00> : vector<8x128xf32>
    %226 = tpu.matmul %223, %225, %cst_176 {dimension_numbers = #tpu.dot_dimension_numbers<[1], [0], [0], [1], [0, 0, 1, 1], [], []>} : vector<8x128xbf16>, vector<128x128xbf16>, vector<8x128xf32> -> vector<8x128xf32>
    %c1_177 = arith.constant 1 : index
    %c0_178 = arith.constant 0 : index
    %c0_179 = arith.constant 0 : index
    %227 = vector.load %arg9[%c1_177, %c0_178, %c0_179] : memref<4x1x128xf32, #tpu.memory_space<vmem>>, vector<1x1x128xf32>
    %228 = vector.shape_cast %227 : vector<1x1x128xf32> to vector<1x128xf32>
    %229 = vector.broadcast %228 : vector<1x128xf32> to vector<8x128xf32>
    %230 = arith.addf %226, %229 : vector<8x128xf32>
    %231 = arith.mulf %230, %72 : vector<8x128xf32>
    %cst_180 = arith.constant 2.500000e-01 : f32
    %232 = vector.broadcast %cst_180 : f32 to vector<8x128xf32>
    %233 = arith.mulf %231, %232 : vector<8x128xf32>
    %234 = arith.addf %233, %188 : vector<8x128xf32>
    %cst_181 = arith.constant dense<0.000000e+00> : vector<8xf32>
    %235 = vector.multi_reduction <add>, %234, %cst_181 [1] : vector<8x128xf32> to vector<8xf32>
    %236 = vector.shape_cast %235 : vector<8xf32> to vector<8x1xf32>
    %cst_182 = arith.constant 1.280000e+02 : f32
    %237 = vector.broadcast %cst_182 : f32 to vector<8x1xf32>
    %238 = arith.divf %236, %237 : vector<8x1xf32>
    %239 = vector.broadcast %238 : vector<8x1xf32> to vector<8x128xf32>
    %240 = arith.subf %234, %239 : vector<8x128xf32>
    %241 = arith.mulf %240, %240 : vector<8x128xf32>
    %cst_183 = arith.constant dense<0.000000e+00> : vector<8xf32>
    %242 = vector.multi_reduction <add>, %241, %cst_183 [1] : vector<8x128xf32> to vector<8xf32>
    %243 = vector.shape_cast %242 : vector<8xf32> to vector<8x1xf32>
    %cst_184 = arith.constant 1.280000e+02 : f32
    %244 = vector.broadcast %cst_184 : f32 to vector<8x1xf32>
    %245 = arith.divf %243, %244 : vector<8x1xf32>
    %246 = vector.broadcast %238 : vector<8x1xf32> to vector<8x128xf32>
    %247 = arith.subf %234, %246 : vector<8x128xf32>
    %cst_185 = arith.constant 9.99999974E-6 : f32
    %248 = vector.broadcast %cst_185 : f32 to vector<8x1xf32>
    %249 = arith.addf %245, %248 : vector<8x1xf32>
    %250 = math.rsqrt %249 : vector<8x1xf32>
    %251 = vector.broadcast %250 : vector<8x1xf32> to vector<8x128xf32>
    %252 = arith.mulf %247, %251 : vector<8x128xf32>
    %253 = arith.mulf %93, %252 : vector<8x128xf32>
    %254 = arith.addf %253, %100 : vector<8x128xf32>
    %255 = arith.truncf %254 : vector<8x128xf32> to vector<8x128xbf16>
    %c2_186 = arith.constant 2 : index
    %c0_187 = arith.constant 0 : index
    %c0_188 = arith.constant 0 : index
    %256 = vector.load %arg6[%c2_186, %c0_187, %c0_188] : memref<4x128x128xbf16, #tpu.memory_space<vmem>>, vector<1x128x128xbf16>
    %257 = vector.shape_cast %256 : vector<1x128x128xbf16> to vector<128x128xbf16>
    %cst_189 = arith.constant dense<0.000000e+00> : vector<8x128xf32>
    %258 = tpu.matmul %255, %257, %cst_189 {dimension_numbers = #tpu.dot_dimension_numbers<[1], [0], [0], [1], [0, 0, 1, 1], [], []>} : vector<8x128xbf16>, vector<128x128xbf16>, vector<8x128xf32> -> vector<8x128xf32>
    %c2_190 = arith.constant 2 : index
    %c0_191 = arith.constant 0 : index
    %c0_192 = arith.constant 0 : index
    %259 = vector.load %arg7[%c2_190, %c0_191, %c0_192] : memref<4x1x128xf32, #tpu.memory_space<vmem>>, vector<1x1x128xf32>
    %260 = vector.shape_cast %259 : vector<1x1x128xf32> to vector<1x128xf32>
    %261 = vector.broadcast %260 : vector<1x128xf32> to vector<8x128xf32>
    %262 = arith.addf %258, %261 : vector<8x128xf32>
    %263 = arith.negf %262 : vector<8x128xf32>
    %264 = math.exp %263 : vector<8x128xf32>
    %cst_193 = arith.constant 1.000000e+00 : f32
    %265 = vector.broadcast %cst_193 : f32 to vector<8x128xf32>
    %266 = arith.addf %265, %264 : vector<8x128xf32>
    %267 = arith.divf %265, %266 : vector<8x128xf32>
    %268 = arith.mulf %262, %267 : vector<8x128xf32>
    %269 = arith.truncf %268 : vector<8x128xf32> to vector<8x128xbf16>
    %c2_194 = arith.constant 2 : index
    %c0_195 = arith.constant 0 : index
    %c0_196 = arith.constant 0 : index
    %270 = vector.load %arg8[%c2_194, %c0_195, %c0_196] : memref<4x128x128xbf16, #tpu.memory_space<vmem>>, vector<1x128x128xbf16>
    %271 = vector.shape_cast %270 : vector<1x128x128xbf16> to vector<128x128xbf16>
    %cst_197 = arith.constant dense<0.000000e+00> : vector<8x128xf32>
    %272 = tpu.matmul %269, %271, %cst_197 {dimension_numbers = #tpu.dot_dimension_numbers<[1], [0], [0], [1], [0, 0, 1, 1], [], []>} : vector<8x128xbf16>, vector<128x128xbf16>, vector<8x128xf32> -> vector<8x128xf32>
    %c2_198 = arith.constant 2 : index
    %c0_199 = arith.constant 0 : index
    %c0_200 = arith.constant 0 : index
    %273 = vector.load %arg9[%c2_198, %c0_199, %c0_200] : memref<4x1x128xf32, #tpu.memory_space<vmem>>, vector<1x1x128xf32>
    %274 = vector.shape_cast %273 : vector<1x1x128xf32> to vector<1x128xf32>
    %275 = vector.broadcast %274 : vector<1x128xf32> to vector<8x128xf32>
    %276 = arith.addf %272, %275 : vector<8x128xf32>
    %277 = arith.mulf %276, %107 : vector<8x128xf32>
    %cst_201 = arith.constant 2.500000e-01 : f32
    %278 = vector.broadcast %cst_201 : f32 to vector<8x128xf32>
    %279 = arith.mulf %277, %278 : vector<8x128xf32>
    %280 = arith.addf %279, %234 : vector<8x128xf32>
    %cst_202 = arith.constant dense<0.000000e+00> : vector<8xf32>
    %281 = vector.multi_reduction <add>, %280, %cst_202 [1] : vector<8x128xf32> to vector<8xf32>
    %282 = vector.shape_cast %281 : vector<8xf32> to vector<8x1xf32>
    %cst_203 = arith.constant 1.280000e+02 : f32
    %283 = vector.broadcast %cst_203 : f32 to vector<8x1xf32>
    %284 = arith.divf %282, %283 : vector<8x1xf32>
    %285 = vector.broadcast %284 : vector<8x1xf32> to vector<8x128xf32>
    %286 = arith.subf %280, %285 : vector<8x128xf32>
    %287 = arith.mulf %286, %286 : vector<8x128xf32>
    %cst_204 = arith.constant dense<0.000000e+00> : vector<8xf32>
    %288 = vector.multi_reduction <add>, %287, %cst_204 [1] : vector<8x128xf32> to vector<8xf32>
    %289 = vector.shape_cast %288 : vector<8xf32> to vector<8x1xf32>
    %cst_205 = arith.constant 1.280000e+02 : f32
    %290 = vector.broadcast %cst_205 : f32 to vector<8x1xf32>
    %291 = arith.divf %289, %290 : vector<8x1xf32>
    %292 = vector.broadcast %284 : vector<8x1xf32> to vector<8x128xf32>
    %293 = arith.subf %280, %292 : vector<8x128xf32>
    %cst_206 = arith.constant 9.99999974E-6 : f32
    %294 = vector.broadcast %cst_206 : f32 to vector<8x1xf32>
    %295 = arith.addf %291, %294 : vector<8x1xf32>
    %296 = math.rsqrt %295 : vector<8x1xf32>
    %297 = vector.broadcast %296 : vector<8x1xf32> to vector<8x128xf32>
    %298 = arith.mulf %293, %297 : vector<8x128xf32>
    %299 = arith.mulf %128, %298 : vector<8x128xf32>
    %300 = arith.addf %299, %135 : vector<8x128xf32>
    %301 = arith.truncf %300 : vector<8x128xf32> to vector<8x128xbf16>
    %c3_207 = arith.constant 3 : index
    %c0_208 = arith.constant 0 : index
    %c0_209 = arith.constant 0 : index
    %302 = vector.load %arg6[%c3_207, %c0_208, %c0_209] : memref<4x128x128xbf16, #tpu.memory_space<vmem>>, vector<1x128x128xbf16>
    %303 = vector.shape_cast %302 : vector<1x128x128xbf16> to vector<128x128xbf16>
    %cst_210 = arith.constant dense<0.000000e+00> : vector<8x128xf32>
    %304 = tpu.matmul %301, %303, %cst_210 {dimension_numbers = #tpu.dot_dimension_numbers<[1], [0], [0], [1], [0, 0, 1, 1], [], []>} : vector<8x128xbf16>, vector<128x128xbf16>, vector<8x128xf32> -> vector<8x128xf32>
    %c3_211 = arith.constant 3 : index
    %c0_212 = arith.constant 0 : index
    %c0_213 = arith.constant 0 : index
    %305 = vector.load %arg7[%c3_211, %c0_212, %c0_213] : memref<4x1x128xf32, #tpu.memory_space<vmem>>, vector<1x1x128xf32>
    %306 = vector.shape_cast %305 : vector<1x1x128xf32> to vector<1x128xf32>
    %307 = vector.broadcast %306 : vector<1x128xf32> to vector<8x128xf32>
    %308 = arith.addf %304, %307 : vector<8x128xf32>
    %309 = arith.negf %308 : vector<8x128xf32>
    %310 = math.exp %309 : vector<8x128xf32>
    %cst_214 = arith.constant 1.000000e+00 : f32
    %311 = vector.broadcast %cst_214 : f32 to vector<8x128xf32>
    %312 = arith.addf %311, %310 : vector<8x128xf32>
    %313 = arith.divf %311, %312 : vector<8x128xf32>
    %314 = arith.mulf %308, %313 : vector<8x128xf32>
    %315 = arith.truncf %314 : vector<8x128xf32> to vector<8x128xbf16>
    %c3_215 = arith.constant 3 : index
    %c0_216 = arith.constant 0 : index
    %c0_217 = arith.constant 0 : index
    %316 = vector.load %arg8[%c3_215, %c0_216, %c0_217] : memref<4x128x128xbf16, #tpu.memory_space<vmem>>, vector<1x128x128xbf16>
    %317 = vector.shape_cast %316 : vector<1x128x128xbf16> to vector<128x128xbf16>
    %cst_218 = arith.constant dense<0.000000e+00> : vector<8x128xf32>
    %318 = tpu.matmul %315, %317, %cst_218 {dimension_numbers = #tpu.dot_dimension_numbers<[1], [0], [0], [1], [0, 0, 1, 1], [], []>} : vector<8x128xbf16>, vector<128x128xbf16>, vector<8x128xf32> -> vector<8x128xf32>
    %c3_219 = arith.constant 3 : index
    %c0_220 = arith.constant 0 : index
    %c0_221 = arith.constant 0 : index
    %319 = vector.load %arg9[%c3_219, %c0_220, %c0_221] : memref<4x1x128xf32, #tpu.memory_space<vmem>>, vector<1x1x128xf32>
    %320 = vector.shape_cast %319 : vector<1x1x128xf32> to vector<1x128xf32>
    %321 = vector.broadcast %320 : vector<1x128xf32> to vector<8x128xf32>
    %322 = arith.addf %318, %321 : vector<8x128xf32>
    %323 = arith.mulf %322, %142 : vector<8x128xf32>
    %cst_222 = arith.constant 2.500000e-01 : f32
    %324 = vector.broadcast %cst_222 : f32 to vector<8x128xf32>
    %325 = arith.mulf %323, %324 : vector<8x128xf32>
    %326 = arith.addf %325, %280 : vector<8x128xf32>
    %c0_223 = arith.constant 0 : index
    %c0_224 = arith.constant 0 : index
    %327 = vector.load %arg10[%c0_223, %c0_224] : memref<8x128xf32, #tpu.memory_space<vmem>>, vector<8x128xf32>
    tpu.vector_store %arg10[%c0_223, %c0_224], %326 {strides = array<i32>} : memref<8x128xf32, #tpu.memory_space<vmem>>, vector<8x128xf32>,
    return
  }
}

</mosaic_0001>

<llo_original>
// kernel: tpu_custom_call.1
$region0: #{tpu_custom_call.1}
  #allocation0 [shape = 'u32[]', space=smem, size = 0x4, offset = 0x4, fixed_abs, tag = 'smem constant byte address 0x4 - core index']
  #allocation1 [shape = 'u32[72,128]{1,0:T(1,128)}', space=vmem, size = 0x9000, scoped, tag = 'internal scratch']
  %s0 = inlined_call_operand.hbm [shape: f32[8,128], index: 0, kind: input, shape index: {}]
  %s1 = inlined_call_operand.hbm [shape: f32[8,128], index: 1, kind: input, shape index: {}]
  %s2 = inlined_call_operand.hbm [shape: bf16[4,128,128], index: 2, kind: input, shape index: {}]
  %s3 = inlined_call_operand.hbm [shape: f32[4,1,128], index: 3, kind: input, shape index: {}]
  %s4 = inlined_call_operand.hbm [shape: bf16[4,3,128,128], index: 4, kind: input, shape index: {}]
  %s5 = inlined_call_operand.hbm [shape: f32[4,3,1,128], index: 5, kind: input, shape index: {}]
  %s6 = inlined_call_operand.hbm [shape: bf16[4,128,128], index: 6, kind: input, shape index: {}]
  %s7 = inlined_call_operand.vmem [shape: f32[4,1,128], index: 7, kind: input, shape index: {}]
  %s8 = inlined_call_operand.hbm [shape: bf16[4,128,128], index: 8, kind: input, shape index: {}]
  %s9 = inlined_call_operand.vmem [shape: f32[4,1,128], index: 9, kind: input, shape index: {}]
  %s10 = inlined_call_operand.hbm [shape: f32[8,128], index: 10, kind: output, shape index: {}]
  %s11 = sld [smem:[#allocation0]]
  $region82: #{tpu_custom_call.1} parent=0
    _
  %s13 = ssub.s32 1, %s11
  %s14 = scalar_select 0, %s13, %s11
  $region1: #{tpu_custom_call.1} parent=0
    #allocation2 [shape = 'u8[4096]{0}', space=vmem, size = 0x1000, scoped, tag = 'input window, operand 0, single buffered']
    #allocation3 [shape = 's32[1]{0}', space=sflag, size = 0x4, scoped, tag = 'scoped memory for tpu_custom_call.1']
    #allocation4 [shape = 's32[1]{0}', space=sflag, size = 0x4, scoped, tag = 'scoped memory for tpu_custom_call.1']
    #allocation5 [shape = 'u8[4096]{0}', space=vmem, size = 0x1000, scoped, tag = 'input window, operand 1, single buffered']
    #allocation6 [shape = 's32[1]{0}', space=sflag, size = 0x4, scoped, tag = 'scoped memory for tpu_custom_call.1']
    #allocation7 [shape = 'u8[131072]{0}', space=vmem, size = 0x20000, scoped, tag = 'input window, operand 2, single buffered']
    #allocation8 [shape = 'u8[2048]{0}', space=vmem, size = 0x800, scoped, tag = 'input window, operand 3, single buffered']
    #allocation9 [shape = 's32[1]{0}', space=sflag, size = 0x4, scoped, tag = 'scoped memory for tpu_custom_call.1']
    #allocation10 [shape = 'u8[393216]{0}', space=vmem, size = 0x60000, scoped, tag = 'input window, operand 4, single buffered']
    #allocation11 [shape = 'u8[6144]{0}', space=vmem, size = 0x1800, scoped, tag = 'input window, operand 5, single buffered']
    #allocation12 [shape = 's32[1]{0}', space=sflag, size = 0x4, scoped, tag = 'scoped memory for tpu_custom_call.1']
    #allocation13 [shape = 'u8[131072]{0}', space=vmem, size = 0x20000, scoped, tag = 'input window, operand 6, single buffered']
    #allocation14 [shape = 'u8[131072]{0}', space=vmem, size = 0x20000, scoped, tag = 'input window, operand 8, single buffered']
    #allocation15 [shape = 's32[1]{0}', space=sflag, size = 0x4, scoped, tag = 'scoped memory for tpu_custom_call.1']
    #allocation16 [shape = 'u8[4096]{0}', space=vmem, size = 0x1000, scoped, tag = 'output window, operand 0, single buffered']
    %15 = vsyncpa [#allocation3], 0
    %16 = vsyncpa [#allocation6], 0
    %17 = vsyncpa [#allocation9], 0
    %18 = vsyncpa [#allocation12], 0
    %19 = vsyncpa [#allocation15], 0
    %20 = vsyncpa [#allocation4], 0
    // Predicated region
    $region2: #{tpu_custom_call.1} parent=1 // pred_check
      _
    $region3: #{tpu_custom_call.1} parent=1 // pred_check_branch
      %22 = sbr.rel (0) target = $region5
    $region4: #{tpu_custom_call.1} parent=1 // pred_region
      %24 = vsyncadd [#allocation3], 0
      %s26 = sshll.u32 %s0, 4
      %s27 = int_to_ptr.hbm [resolvable:$true] %s26
      %s28 = sshll.u32 [#allocation2], 4
      %s29 = int_to_ptr.vmem [resolvable:$true] %s28
      %31 = dma.hbm_to_vmem [thread:$0]  %s27, 128, %s29, [#allocation3]
    $region5: #{tpu_custom_call.1} parent=1 // pred_fallthru
      _
    // Predicated region
    $region6: #{tpu_custom_call.1} parent=1 // pred_check
      _
    $region7: #{tpu_custom_call.1} parent=1 // pred_check_branch
      %33 = sbr.rel (0) target = $region9
    $region8: #{tpu_custom_call.1} parent=1 // pred_region
      %35 = vsyncadd [#allocation6], 0
      %s37 = sshll.u32 %s1, 4
      %s38 = int_to_ptr.hbm [resolvable:$true] %s37
      %s39 = sshll.u32 [#allocation5], 4
      %s40 = int_to_ptr.vmem [resolvable:$true] %s39
      %42 = dma.hbm_to_vmem [thread:$0]  %s38, 128, %s40, [#allocation6]
    $region9: #{tpu_custom_call.1} parent=1 // pred_fallthru
      _
    // Predicated region
    $region10: #{tpu_custom_call.1} parent=1 // pred_check
      _
    $region11: #{tpu_custom_call.1} parent=1 // pred_check_branch
      %44 = sbr.rel (0) target = $region13
    $region12: #{tpu_custom_call.1} parent=1 // pred_region
      %46 = vsyncadd [#allocation6], 0
      %s47 = sshll.u32 %s2, 4
      %s48 = int_to_ptr.hbm [resolvable:$true] %s47
      %s49 = sshll.u32 [#allocation7], 4
      %s50 = int_to_ptr.vmem [resolvable:$true] %s49
      %55 = dma.hbm_to_vmem [thread:$0]  %s48, 4096, %s50, [#allocation6], 64, 64, 4
    $region13: #{tpu_custom_call.1} parent=1 // pred_fallthru
      _
    // Predicated region
    $region14: #{tpu_custom_call.1} parent=1 // pred_check
      _
    $region15: #{tpu_custom_call.1} parent=1 // pred_check_branch
      %57 = sbr.rel (0) target = $region17
    $region16: #{tpu_custom_call.1} parent=1 // pred_region
      %59 = vsyncadd [#allocation9], 0
      %s60 = sshll.u32 %s3, 4
      %s61 = int_to_ptr.hbm [resolvable:$true] %s60
      %s62 = sshll.u32 [#allocation8], 4
      %s63 = int_to_ptr.vmem [resolvable:$true] %s62
      %68 = dma.hbm_to_vmem [thread:$0]  %s61, 64, %s63, [#allocation9], 16, 16, 1
    $region17: #{tpu_custom_call.1} parent=1 // pred_fallthru
      _
    // Predicated region
    $region18: #{tpu_custom_call.1} parent=1 // pred_check
      _
    $region19: #{tpu_custom_call.1} parent=1 // pred_check_branch
      %70 = sbr.rel (0) target = $region21
    $region20: #{tpu_custom_call.1} parent=1 // pred_region
      %72 = vsyncadd [#allocation9], 0
      %s73 = sshll.u32 %s4, 4
      %s74 = int_to_ptr.hbm [resolvable:$true] %s73
      %s75 = sshll.u32 [#allocation10], 4
      %s76 = int_to_ptr.vmem [resolvable:$true] %s75
      %81 = dma.hbm_to_vmem [thread:$0]  %s74, 12288, %s76, [#allocation9], 64, 64, 4
    $region21: #{tpu_custom_call.1} parent=1 // pred_fallthru
      _
    // Predicated region
    $region22: #{tpu_custom_call.1} parent=1 // pred_check
      _
    $region23: #{tpu_custom_call.1} parent=1 // pred_check_branch
      %83 = sbr.rel (0) target = $region25
    $region24: #{tpu_custom_call.1} parent=1 // pred_region
      %85 = vsyncadd [#allocation12], 0
      %s86 = sshll.u32 %s5, 4
      %s87 = int_to_ptr.hbm [resolvable:$true] %s86
      %s88 = sshll.u32 [#allocation11], 4
      %s89 = int_to_ptr.vmem [resolvable:$true] %s88
      %94 = dma.hbm_to_vmem [thread:$0]  %s87, 192, %s89, [#allocation12], 16, 16, 1
    $region25: #{tpu_custom_call.1} parent=1 // pred_fallthru
      _
    // Predicated region
    $region26: #{tpu_custom_call.1} parent=1 // pred_check
      _
    $region27: #{tpu_custom_call.1} parent=1 // pred_check_branch
      %96 = sbr.rel (0) target = $region29
    $region28: #{tpu_custom_call.1} parent=1 // pred_region
      %98 = vsyncadd [#allocation12], 0
      %s99 = sshll.u32 %s6, 4
      %s100 = int_to_ptr.hbm [resolvable:$true] %s99
      %s101 = sshll.u32 [#allocation13], 4
      %s102 = int_to_ptr.vmem [resolvable:$true] %s101
      %107 = dma.hbm_to_vmem [thread:$0]  %s100, 4096, %s102, [#allocation12], 64, 64, 4
    $region29: #{tpu_custom_call.1} parent=1 // pred_fallthru
      _
    // Predicated region
    $region30: #{tpu_custom_call.1} parent=1 // pred_check
      _
    $region31: #{tpu_custom_call.1} parent=1 // pred_check_branch
      %109 = sbr.rel (0) target = $region33
    $region32: #{tpu_custom_call.1} parent=1 // pred_region
      _
    $region33: #{tpu_custom_call.1} parent=1 // pred_fallthru
      _
    // Predicated region
    $region34: #{tpu_custom_call.1} parent=1 // pred_check
      _
    $region35: #{tpu_custom_call.1} parent=1 // pred_check_branch
      %111 = sbr.rel (0) target = $region37
    $region36: #{tpu_custom_call.1} parent=1 // pred_region
      %113 = vsyncadd [#allocation15], 0
      %s114 = sshll.u32 %s8, 4
      %s115 = int_to_ptr.hbm [resolvable:$true] %s114
      %s116 = sshll.u32 [#allocation14], 4
      %s117 = int_to_ptr.vmem [resolvable:$true] %s116
      %122 = dma.hbm_to_vmem [thread:$0]  %s115, 4096, %s117, [#allocation15], 64, 64, 4
    $region37: #{tpu_custom_call.1} parent=1 // pred_fallthru
      _
    // Predicated region
    $region38: #{tpu_custom_call.1} parent=1 // pred_check
      _
    $region39: #{tpu_custom_call.1} parent=1 // pred_check_branch
      %124 = sbr.rel (0) target = $region41
    $region40: #{tpu_custom_call.1} parent=1 // pred_region
      _
    $region41: #{tpu_custom_call.1} parent=1 // pred_fallthru
      _
    // Predicated region
    $region42: #{tpu_custom_call.1} parent=1 // pred_check
      _
    $region43: #{tpu_custom_call.1} parent=1 // pred_check_branch
      %126 = sbr.rel (0) target = $region45
    $region44: #{tpu_custom_call.1} parent=1 // pred_region
      %128 = dma.done [#allocation3], 128
    $region45: #{tpu_custom_call.1} parent=1 // pred_fallthru
      _
    // Predicated region
    $region46: #{tpu_custom_call.1} parent=1 // pred_check
      _
    $region47: #{tpu_custom_call.1} parent=1 // pred_check_branch
      %130 = sbr.rel (0) target = $region49
    $region48: #{tpu_custom_call.1} parent=1 // pred_region
      %132 = dma.done [#allocation6], 128
    $region49: #{tpu_custom_call.1} parent=1 // pred_fallthru
      _
    // Predicated region
    $region50: #{tpu_custom_call.1} parent=1 // pred_check
      _
    $region51: #{tpu_custom_call.1} parent=1 // pred_check_branch
      %134 = sbr.rel (0) target = $region53
    $region52: #{tpu_custom_call.1} parent=1 // pred_region
      %136 = dma.done [#allocation6], 4096
    $region53: #{tpu_custom_call.1} parent=1 // pred_fallthru
      _
    // Predicated region
    $region54: #{tpu_custom_call.1} parent=1 // pred_check
      _
    $region55: #{tpu_custom_call.1} parent=1 // pred_check_branch
      %138 = sbr.rel (0) target = $region57
    $region56: #{tpu_custom_call.1} parent=1 // pred_region
      %140 = dma.done [#allocation9], 64
    $region57: #{tpu_custom_call.1} parent=1 // pred_fallthru
      _
    // Predicated region
    $region58: #{tpu_custom_call.1} parent=1 // pred_check
      _
    $region59: #{tpu_custom_call.1} parent=1 // pred_check_branch
      %142 = sbr.rel (0) target = $region61
    $region60: #{tpu_custom_call.1} parent=1 // pred_region
      %144 = dma.done [#allocation9], 12288
    $region61: #{tpu_custom_call.1} parent=1 // pred_fallthru
      _
    // Predicated region
    $region62: #{tpu_custom_call.1} parent=1 // pred_check
      _
    $region63: #{tpu_custom_call.1} parent=1 // pred_check_branch
      %146 = sbr.rel (0) target = $region65
    $region64: #{tpu_custom_call.1} parent=1 // pred_region
      %148 = dma.done [#allocation12], 192
    $region65: #{tpu_custom_call.1} parent=1 // pred_fallthru
      _
    // Predicated region
    $region66: #{tpu_custom_call.1} parent=1 // pred_check
      _
    $region67: #{tpu_custom_call.1} parent=1 // pred_check_branch
      %150 = sbr.rel (0) target = $region69
    $region68: #{tpu_custom_call.1} parent=1 // pred_region
      %152 = dma.done [#allocation12], 4096
    $region69: #{tpu_custom_call.1} parent=1 // pred_fallthru
      _
    // Predicated region
    $region70: #{tpu_custom_call.1} parent=1 // pred_check
      _
    $region71: #{tpu_custom_call.1} parent=1 // pred_check_branch
      %154 = sbr.rel (0) target = $region73
    $region72: #{tpu_custom_call.1} parent=1 // pred_region
      %156 = dma.done [#allocation15], 4096
    $region73: #{tpu_custom_call.1} parent=1 // pred_fallthru
      _
    %v157 = vld [vmem:[#allocation2] sm:$0xff]
    %v158 = vld [vmem:[#allocation5] sm:$0xff]
    %v159 = vpack.c.bf16 %v158, %v158
    %v160 = vld [vmem:[#allocation7] sm:$0xf]
    %v161 = vld [vmem:[#allocation7 + $0x4] sm:$0xf]
    %v162 = vld [vmem:[#allocation7 + $0x8] sm:$0xf]
    %v163 = vld [vmem:[#allocation7 + $0xc] sm:$0xf]
    %v164 = vld [vmem:[#allocation7 + $0x10] sm:$0xf]
    %v165 = vld [vmem:[#allocation7 + $0x14] sm:$0xf]
    %v166 = vld [vmem:[#allocation7 + $0x18] sm:$0xf]
    %v167 = vld [vmem:[#allocation7 + $0x1c] sm:$0xf]
    %v168 = vld [vmem:[#allocation7 + $0x20] sm:$0xf]
    %v169 = vld [vmem:[#allocation7 + $0x24] sm:$0xf]
    %v170 = vld [vmem:[#allocation7 + $0x28] sm:$0xf]
    %v171 = vld [vmem:[#allocation7 + $0x2c] sm:$0xf]
    %v172 = vld [vmem:[#allocation7 + $0x30] sm:$0xf]
    %v173 = vld [vmem:[#allocation7 + $0x34] sm:$0xf]
    %v174 = vld [vmem:[#allocation7 + $0x38] sm:$0xf]
    %v175 = vld [vmem:[#allocation7 + $0x3c] sm:$0xf]
    %v176 = vld [vmem:[#allocation8] sm:$0x1]
    %v178 = vperm.slane %v176, 0
    %v196 = vunpack.c.l.b16 %v160
    %v197 = vunpack.c.l.b16 %v161
    %v198 = vunpack.c.l.b16 %v162
    %v199 = vunpack.c.l.b16 %v163
    %v200 = vunpack.c.l.b16 %v164
    %v201 = vunpack.c.l.b16 %v165
    %v202 = vunpack.c.l.b16 %v166
    %v203 = vunpack.c.l.b16 %v167
    %v204 = vunpack.c.l.b16 %v168
    %v205 = vunpack.c.l.b16 %v169
    %v206 = vunpack.c.l.b16 %v170
    %v207 = vunpack.c.l.b16 %v171
    %v208 = vunpack.c.l.b16 %v172
    %v209 = vunpack.c.l.b16 %v173
    %v210 = vunpack.c.l.b16 %v174
    %v211 = vunpack.c.l.b16 %v175
    %v212 = vpack.c.b16 %v197, %v196
    %v213 = vpack.c.b16 %v199, %v198
    %v214 = vpack.c.b16 %v201, %v200
    %v215 = vpack.c.b16 %v203, %v202
    %v216 = vpack.c.b16 %v205, %v204
    %v217 = vpack.c.b16 %v207, %v206
    %v218 = vpack.c.b16 %v209, %v208
    %v219 = vpack.c.b16 %v211, %v210
    %228 = vmatpush.bf16.msra.mxu0 %v219
    %229 = vmatpush.bf16.msra.mxu0 %v218
    %230 = vmatpush.bf16.msra.mxu0 %v217
    %231 = vmatpush.bf16.msra.mxu0 %v216
    %232 = vmatpush.bf16.msra.mxu0 %v215
    %233 = vmatpush.bf16.msra.mxu0 %v214
    %234 = vmatpush.bf16.msra.mxu0 %v213
    %235 = vmatpush.bf16.msra.mxu0 %v212
    %236 = vmatmul.bf16.gmra.mxu0 %v159
    %v237 = vpop.f32.mrf.mxu0
    %v238 = vadd.f32 %v178, %v237
    %v239 = vpop.f32.mrf.mxu0
    %240 = vdwg.mxu0
    %v241 = vxor.u32 %v238, 2147483648
    %v242 = vmul.f32 %v241, 1.442695
    %v243 = vpow.pop %v242
    %v244 = vadd.f32 %v243, 1.0
    %v245 = vrcp.pop %v244
    %v246 = vmul.f32 %v244, %v245
    %v247 = vsub.f32 1.0, %v246
    %v248 = vmul.f32 %v245, %v247
    %v249 = vadd.f32 %v245, %v248
    %vm250 = vweird.f32 %v244
    %vm251 = vweird.f32 %v245
    %vm252 = vmor %vm250, %vm251
    %v253 = vsel %vm252, %v245, %v249
    %v254 = vand.u32 2147483647, %v244
    %vm255 = vcmp.eq.f32.partialorder %v254, 8.507059e+37
    %v256 = vand.u32 %v244, 2147483648
    %v257 = vor.u32 1.1754944e-38, %v256
    %v258 = vsel %vm255, %v257, %v253
    %v259 = vmul.f32 1.0, %v258
    %v260 = vmul.f32 %v238, %v259
    %v261 = vpack.c.bf16 %v260, %v260
    %v262 = vld [vmem:[#allocation10] sm:$0xf]
    %v263 = vld [vmem:[#allocation10 + $0x4] sm:$0xf]
    %v264 = vld [vmem:[#allocation10 + $0x8] sm:$0xf]
    %v265 = vld [vmem:[#allocation10 + $0xc] sm:$0xf]
    %v266 = vld [vmem:[#allocation10 + $0x10] sm:$0xf]
    %v267 = vld [vmem:[#allocation10 + $0x14] sm:$0xf]
    %v268 = vld [vmem:[#allocation10 + $0x18] sm:$0xf]
    %v269 = vld [vmem:[#allocation10 + $0x1c] sm:$0xf]
    %v270 = vld [vmem:[#allocation10 + $0x20] sm:$0xf]
    %v271 = vld [vmem:[#allocation10 + $0x24] sm:$0xf]
    %v272 = vld [vmem:[#allocation10 + $0x28] sm:$0xf]
    %v273 = vld [vmem:[#allocation10 + $0x2c] sm:$0xf]
    %v274 = vld [vmem:[#allocation10 + $0x30] sm:$0xf]
    %v275 = vld [vmem:[#allocation10 + $0x34] sm:$0xf]
    %v276 = vld [vmem:[#allocation10 + $0x38] sm:$0xf]
    %v277 = vld [vmem:[#allocation10 + $0x3c] sm:$0xf]
    %v278 = vld [vmem:[#allocation11] sm:$0x1]
    %v280 = vperm.slane %v278, 0
    %v298 = vunpack.c.l.b16 %v262
    %v299 = vunpack.c.l.b16 %v263
    %v300 = vunpack.c.l.b16 %v264
    %v301 = vunpack.c.l.b16 %v265
    %v302 = vunpack.c.l.b16 %v266
    %v303 = vunpack.c.l.b16 %v267
    %v304 = vunpack.c.l.b16 %v268
    %v305 = vunpack.c.l.b16 %v269
    %v306 = vunpack.c.l.b16 %v270
    %v307 = vunpack.c.l.b16 %v271
    %v308 = vunpack.c.l.b16 %v272
    %v309 = vunpack.c.l.b16 %v273
    %v310 = vunpack.c.l.b16 %v274
    %v311 = vunpack.c.l.b16 %v275
    %v312 = vunpack.c.l.b16 %v276
    %v313 = vunpack.c.l.b16 %v277
    %v314 = vpack.c.b16 %v299, %v298
    %v315 = vpack.c.b16 %v301, %v300
    %v316 = vpack.c.b16 %v303, %v302
    %v317 = vpack.c.b16 %v305, %v304
    %v318 = vpack.c.b16 %v307, %v306
    %v319 = vpack.c.b16 %v309, %v308
    %v320 = vpack.c.b16 %v311, %v310
    %v321 = vpack.c.b16 %v313, %v312
    %330 = vmatpush.bf16.msra.mxu0 %v321
    %331 = vmatpush.bf16.msra.mxu0 %v320
    %332 = vmatpush.bf16.msra.mxu0 %v319
    %333 = vmatpush.bf16.msra.mxu0 %v318
    %334 = vmatpush.bf16.msra.mxu0 %v317
    %335 = vmatpush.bf16.msra.mxu0 %v316
    %336 = vmatpush.bf16.msra.mxu0 %v315
    %337 = vmatpush.bf16.msra.mxu0 %v314
    %338 = vmatmul.bf16.gmra.mxu0 %v261
    %v339 = vpop.f32.mrf.mxu0
    %v340 = vadd.f32 %v280, %v339
    %v341 = vpop.f32.mrf.mxu0
    %342 = vdwg.mxu0
    %s343 = scalar_lea.vmem [#allocation10], 64
    %v344 = vld [vmem:[%s343] sm:$0xf]
    %v345 = vld [vmem:[%s343 + $0x4] sm:$0xf]
    %v346 = vld [vmem:[%s343 + $0x8] sm:$0xf]
    %v347 = vld [vmem:[%s343 + $0xc] sm:$0xf]
    %v348 = vld [vmem:[%s343 + $0x10] sm:$0xf]
    %v349 = vld [vmem:[%s343 + $0x14] sm:$0xf]
    %v350 = vld [vmem:[%s343 + $0x18] sm:$0xf]
    %v351 = vld [vmem:[%s343 + $0x1c] sm:$0xf]
    %v352 = vld [vmem:[%s343 + $0x20] sm:$0xf]
    %v353 = vld [vmem:[%s343 + $0x24] sm:$0xf]
    %v354 = vld [vmem:[%s343 + $0x28] sm:$0xf]
    %v355 = vld [vmem:[%s343 + $0x2c] sm:$0xf]
    %v356 = vld [vmem:[%s343 + $0x30] sm:$0xf]
    %v357 = vld [vmem:[%s343 + $0x34] sm:$0xf]
    %v358 = vld [vmem:[%s343 + $0x38] sm:$0xf]
    %v359 = vld [vmem:[%s343 + $0x3c] sm:$0xf]
    %s360 = scalar_lea.vmem [#allocation11], 1
    %v361 = vld [vmem:[%s360] sm:$0x1]
    %v363 = vperm.slane %v361, 0
    %v381 = vunpack.c.l.b16 %v344
    %v382 = vunpack.c.l.b16 %v345
    %v383 = vunpack.c.l.b16 %v346
    %v384 = vunpack.c.l.b16 %v347
    %v385 = vunpack.c.l.b16 %v348
    %v386 = vunpack.c.l.b16 %v349
    %v387 = vunpack.c.l.b16 %v350
    %v388 = vunpack.c.l.b16 %v351
    %v389 = vunpack.c.l.b16 %v352
    %v390 = vunpack.c.l.b16 %v353
    %v391 = vunpack.c.l.b16 %v354
    %v392 = vunpack.c.l.b16 %v355
    %v393 = vunpack.c.l.b16 %v356
    %v394 = vunpack.c.l.b16 %v357
    %v395 = vunpack.c.l.b16 %v358
    %v396 = vunpack.c.l.b16 %v359
    %v397 = vpack.c.b16 %v382, %v381
    %v398 = vpack.c.b16 %v384, %v383
    %v399 = vpack.c.b16 %v386, %v385
    %v400 = vpack.c.b16 %v388, %v387
    %v401 = vpack.c.b16 %v390, %v389
    %v402 = vpack.c.b16 %v392, %v391
    %v403 = vpack.c.b16 %v394, %v393
    %v404 = vpack.c.b16 %v396, %v395
    %413 = vmatpush.bf16.msra.mxu0 %v404
    %414 = vmatpush.bf16.msra.mxu0 %v403
    %415 = vmatpush.bf16.msra.mxu0 %v402
    %416 = vmatpush.bf16.msra.mxu0 %v401
    %417 = vmatpush.bf16.msra.mxu0 %v400
    %418 = vmatpush.bf16.msra.mxu0 %v399
    %419 = vmatpush.bf16.msra.mxu0 %v398
    %420 = vmatpush.bf16.msra.mxu0 %v397
    %421 = vmatmul.bf16.gmra.mxu0 %v261
    %v422 = vpop.f32.mrf.mxu0
    %v423 = vadd.f32 %v363, %v422
    %v424 = vpop.f32.mrf.mxu0
    %425 = vdwg.mxu0
    %s426 = scalar_lea.vmem [#allocation10], 128
    %v427 = vld [vmem:[%s426] sm:$0xf]
    %v428 = vld [vmem:[%s426 + $0x4] sm:$0xf]
    %v429 = vld [vmem:[%s426 + $0x8] sm:$0xf]
    %v430 = vld [vmem:[%s426 + $0xc] sm:$0xf]
    %v431 = vld [vmem:[%s426 + $0x10] sm:$0xf]
    %v432 = vld [vmem:[%s426 + $0x14] sm:$0xf]
    %v433 = vld [vmem:[%s426 + $0x18] sm:$0xf]
    %v434 = vld [vmem:[%s426 + $0x1c] sm:$0xf]
    %v435 = vld [vmem:[%s426 + $0x20] sm:$0xf]
    %v436 = vld [vmem:[%s426 + $0x24] sm:$0xf]
    %v437 = vld [vmem:[%s426 + $0x28] sm:$0xf]
    %v438 = vld [vmem:[%s426 + $0x2c] sm:$0xf]
    %v439 = vld [vmem:[%s426 + $0x30] sm:$0xf]
    %v440 = vld [vmem:[%s426 + $0x34] sm:$0xf]
    %v441 = vld [vmem:[%s426 + $0x38] sm:$0xf]
    %v442 = vld [vmem:[%s426 + $0x3c] sm:$0xf]
    %s443 = scalar_lea.vmem [#allocation11], 2
    %v444 = vld [vmem:[%s443] sm:$0x1]
    %v446 = vperm.slane %v444, 0
    %v464 = vunpack.c.l.b16 %v427
    %v465 = vunpack.c.l.b16 %v428
    %v466 = vunpack.c.l.b16 %v429
    %v467 = vunpack.c.l.b16 %v430
    %v468 = vunpack.c.l.b16 %v431
    %v469 = vunpack.c.l.b16 %v432
    %v470 = vunpack.c.l.b16 %v433
    %v471 = vunpack.c.l.b16 %v434
    %v472 = vunpack.c.l.b16 %v435
    %v473 = vunpack.c.l.b16 %v436
    %v474 = vunpack.c.l.b16 %v437
    %v475 = vunpack.c.l.b16 %v438
    %v476 = vunpack.c.l.b16 %v439
    %v477 = vunpack.c.l.b16 %v440
    %v478 = vunpack.c.l.b16 %v441
    %v479 = vunpack.c.l.b16 %v442
    %v480 = vpack.c.b16 %v465, %v464
    %v481 = vpack.c.b16 %v467, %v466
    %v482 = vpack.c.b16 %v469, %v468
    %v483 = vpack.c.b16 %v471, %v470
    %v484 = vpack.c.b16 %v473, %v472
    %v485 = vpack.c.b16 %v475, %v474
    %v486 = vpack.c.b16 %v477, %v476
    %v487 = vpack.c.b16 %v479, %v478
    %496 = vmatpush.bf16.msra.mxu0 %v487
    %497 = vmatpush.bf16.msra.mxu0 %v486
    %498 = vmatpush.bf16.msra.mxu0 %v485
    %499 = vmatpush.bf16.msra.mxu0 %v484
    %500 = vmatpush.bf16.msra.mxu0 %v483
    %501 = vmatpush.bf16.msra.mxu0 %v482
    %502 = vmatpush.bf16.msra.mxu0 %v481
    %503 = vmatpush.bf16.msra.mxu0 %v480
    %504 = vmatmul.bf16.gmra.mxu0 %v261
    %v505 = vpop.f32.mrf.mxu0
    %v506 = vadd.f32 %v446, %v505
    %v507 = vpop.f32.mrf.mxu0
    %508 = vdwg.mxu0
    %s509 = scalar_lea.vmem [#allocation7], 64
    %v510 = vld [vmem:[%s509] sm:$0xf]
    %v511 = vld [vmem:[%s509 + $0x4] sm:$0xf]
    %v512 = vld [vmem:[%s509 + $0x8] sm:$0xf]
    %v513 = vld [vmem:[%s509 + $0xc] sm:$0xf]
    %v514 = vld [vmem:[%s509 + $0x10] sm:$0xf]
    %v515 = vld [vmem:[%s509 + $0x14] sm:$0xf]
    %v516 = vld [vmem:[%s509 + $0x18] sm:$0xf]
    %v517 = vld [vmem:[%s509 + $0x1c] sm:$0xf]
    %v518 = vld [vmem:[%s509 + $0x20] sm:$0xf]
    %v519 = vld [vmem:[%s509 + $0x24] sm:$0xf]
    %v520 = vld [vmem:[%s509 + $0x28] sm:$0xf]
    %v521 = vld [vmem:[%s509 + $0x2c] sm:$0xf]
    %v522 = vld [vmem:[%s509 + $0x30] sm:$0xf]
    %v523 = vld [vmem:[%s509 + $0x34] sm:$0xf]
    %v524 = vld [vmem:[%s509 + $0x38] sm:$0xf]
    %v525 = vld [vmem:[%s509 + $0x3c] sm:$0xf]
    %s526 = scalar_lea.vmem [#allocation8], 1
    %v527 = vld [vmem:[%s526] sm:$0x1]
    %v529 = vperm.slane %v527, 0
    %v547 = vunpack.c.l.b16 %v510
    %v548 = vunpack.c.l.b16 %v511
    %v549 = vunpack.c.l.b16 %v512
    %v550 = vunpack.c.l.b16 %v513
    %v551 = vunpack.c.l.b16 %v514
    %v552 = vunpack.c.l.b16 %v515
    %v553 = vunpack.c.l.b16 %v516
    %v554 = vunpack.c.l.b16 %v517
    %v555 = vunpack.c.l.b16 %v518
    %v556 = vunpack.c.l.b16 %v519
    %v557 = vunpack.c.l.b16 %v520
    %v558 = vunpack.c.l.b16 %v521
    %v559 = vunpack.c.l.b16 %v522
    %v560 = vunpack.c.l.b16 %v523
    %v561 = vunpack.c.l.b16 %v524
    %v562 = vunpack.c.l.b16 %v525
    %v563 = vpack.c.b16 %v548, %v547
    %v564 = vpack.c.b16 %v550, %v549
    %v565 = vpack.c.b16 %v552, %v551
    %v566 = vpack.c.b16 %v554, %v553
    %v567 = vpack.c.b16 %v556, %v555
    %v568 = vpack.c.b16 %v558, %v557
    %v569 = vpack.c.b16 %v560, %v559
    %v570 = vpack.c.b16 %v562, %v561
    %579 = vmatpush.bf16.msra.mxu0 %v570
    %580 = vmatpush.bf16.msra.mxu0 %v569
    %581 = vmatpush.bf16.msra.mxu0 %v568
    %582 = vmatpush.bf16.msra.mxu0 %v567
    %583 = vmatpush.bf16.msra.mxu0 %v566
    %584 = vmatpush.bf16.msra.mxu0 %v565
    %585 = vmatpush.bf16.msra.mxu0 %v564
    %586 = vmatpush.bf16.msra.mxu0 %v563
    %587 = vmatmul.bf16.gmra.mxu0 %v159
    %v588 = vpop.f32.mrf.mxu0
    %v589 = vadd.f32 %v529, %v588
    %v590 = vpop.f32.mrf.mxu0
    %591 = vdwg.mxu0
    %v592 = vxor.u32 %v589, 2147483648
    %v593 = vmul.f32 %v592, 1.442695
    %v594 = vpow.pop %v593
    %v595 = vadd.f32 %v594, 1.0
    %v596 = vrcp.pop %v595
    %v597 = vmul.f32 %v595, %v596
    %v598 = vsub.f32 1.0, %v597
    %v599 = vmul.f32 %v596, %v598
    %v600 = vadd.f32 %v596, %v599
    %vm601 = vweird.f32 %v595
    %vm602 = vweird.f32 %v596
    %vm603 = vmor %vm601, %vm602
    %v604 = vsel %vm603, %v596, %v600
    %v605 = vand.u32 2147483647, %v595
    %vm606 = vcmp.eq.f32.partialorder %v605, 8.507059e+37
    %v607 = vand.u32 %v595, 2147483648
    %v608 = vor.u32 1.1754944e-38, %v607
    %v609 = vsel %vm606, %v608, %v604
    %v610 = vmul.f32 1.0, %v609
    %v611 = vmul.f32 %v589, %v610
    %v612 = vpack.c.bf16 %v611, %v611
    %s613 = scalar_lea.vmem [#allocation10], 192
    %v614 = vld [vmem:[%s613] sm:$0xf]
    %v615 = vld [vmem:[%s613 + $0x4] sm:$0xf]
    %v616 = vld [vmem:[%s613 + $0x8] sm:$0xf]
    %v617 = vld [vmem:[%s613 + $0xc] sm:$0xf]
    %v618 = vld [vmem:[%s613 + $0x10] sm:$0xf]
    %v619 = vld [vmem:[%s613 + $0x14] sm:$0xf]
    %v620 = vld [vmem:[%s613 + $0x18] sm:$0xf]
    %v621 = vld [vmem:[%s613 + $0x1c] sm:$0xf]
    %v622 = vld [vmem:[%s613 + $0x20] sm:$0xf]
    %v623 = vld [vmem:[%s613 + $0x24] sm:$0xf]
    %v624 = vld [vmem:[%s613 + $0x28] sm:$0xf]
    %v625 = vld [vmem:[%s613 + $0x2c] sm:$0xf]
    %v626 = vld [vmem:[%s613 + $0x30] sm:$0xf]
    %v627 = vld [vmem:[%s613 + $0x34] sm:$0xf]
    %v628 = vld [vmem:[%s613 + $0x38] sm:$0xf]
    %v629 = vld [vmem:[%s613 + $0x3c] sm:$0xf]
    %s630 = scalar_lea.vmem [#allocation11], 3
    %v631 = vld [vmem:[%s630] sm:$0x1]
    %v633 = vperm.slane %v631, 0
    %v651 = vunpack.c.l.b16 %v614
    %v652 = vunpack.c.l.b16 %v615
    %v653 = vunpack.c.l.b16 %v616
    %v654 = vunpack.c.l.b16 %v617
    %v655 = vunpack.c.l.b16 %v618
    %v656 = vunpack.c.l.b16 %v619
    %v657 = vunpack.c.l.b16 %v620
    %v658 = vunpack.c.l.b16 %v621
    %v659 = vunpack.c.l.b16 %v622
    %v660 = vunpack.c.l.b16 %v623
    %v661 = vunpack.c.l.b16 %v624
    %v662 = vunpack.c.l.b16 %v625
    %v663 = vunpack.c.l.b16 %v626
    %v664 = vunpack.c.l.b16 %v627
    %v665 = vunpack.c.l.b16 %v628
    %v666 = vunpack.c.l.b16 %v629
    %v667 = vpack.c.b16 %v652, %v651
    %v668 = vpack.c.b16 %v654, %v653
    %v669 = vpack.c.b16 %v656, %v655
    %v670 = vpack.c.b16 %v658, %v657
    %v671 = vpack.c.b16 %v660, %v659
    %v672 = vpack.c.b16 %v662, %v661
    %v673 = vpack.c.b16 %v664, %v663
    %v674 = vpack.c.b16 %v666, %v665
    %683 = vmatpush.bf16.msra.mxu0 %v674
    %684 = vmatpush.bf16.msra.mxu0 %v673
    %685 = vmatpush.bf16.msra.mxu0 %v672
    %686 = vmatpush.bf16.msra.mxu0 %v671
    %687 = vmatpush.bf16.msra.mxu0 %v670
    %688 = vmatpush.bf16.msra.mxu0 %v669
    %689 = vmatpush.bf16.msra.mxu0 %v668
    %690 = vmatpush.bf16.msra.mxu0 %v667
    %691 = vmatmul.bf16.gmra.mxu0 %v612
    %v692 = vpop.f32.mrf.mxu0
    %v693 = vadd.f32 %v633, %v692
    %v694 = vpop.f32.mrf.mxu0
    %695 = vdwg.mxu0
    %s696 = scalar_lea.vmem [#allocation10], 256
    %v697 = vld [vmem:[%s696] sm:$0xf]
    %v698 = vld [vmem:[%s696 + $0x4] sm:$0xf]
    %v699 = vld [vmem:[%s696 + $0x8] sm:$0xf]
    %v700 = vld [vmem:[%s696 + $0xc] sm:$0xf]
    %v701 = vld [vmem:[%s696 + $0x10] sm:$0xf]
    %v702 = vld [vmem:[%s696 + $0x14] sm:$0xf]
    %v703 = vld [vmem:[%s696 + $0x18] sm:$0xf]
    %v704 = vld [vmem:[%s696 + $0x1c] sm:$0xf]
    %v705 = vld [vmem:[%s696 + $0x20] sm:$0xf]
    %v706 = vld [vmem:[%s696 + $0x24] sm:$0xf]
    %v707 = vld [vmem:[%s696 + $0x28] sm:$0xf]
    %v708 = vld [vmem:[%s696 + $0x2c] sm:$0xf]
    %v709 = vld [vmem:[%s696 + $0x30] sm:$0xf]
    %v710 = vld [vmem:[%s696 + $0x34] sm:$0xf]
    %v711 = vld [vmem:[%s696 + $0x38] sm:$0xf]
    %v712 = vld [vmem:[%s696 + $0x3c] sm:$0xf]
    %s713 = scalar_lea.vmem [#allocation11], 4
    %v714 = vld [vmem:[%s713] sm:$0x1]
    %v716 = vperm.slane %v714, 0
    %v734 = vunpack.c.l.b16 %v697
    %v735 = vunpack.c.l.b16 %v698
    %v736 = vunpack.c.l.b16 %v699
    %v737 = vunpack.c.l.b16 %v700
    %v738 = vunpack.c.l.b16 %v701
    %v739 = vunpack.c.l.b16 %v702
    %v740 = vunpack.c.l.b16 %v703
    %v741 = vunpack.c.l.b16 %v704
    %v742 = vunpack.c.l.b16 %v705
    %v743 = vunpack.c.l.b16 %v706
    %v744 = vunpack.c.l.b16 %v707
    %v745 = vunpack.c.l.b16 %v708
    %v746 = vunpack.c.l.b16 %v709
    %v747 = vunpack.c.l.b16 %v710
    %v748 = vunpack.c.l.b16 %v711
    %v749 = vunpack.c.l.b16 %v712
    %v750 = vpack.c.b16 %v735, %v734
    %v751 = vpack.c.b16 %v737, %v736
    %v752 = vpack.c.b16 %v739, %v738
    %v753 = vpack.c.b16 %v741, %v740
    %v754 = vpack.c.b16 %v743, %v742
    %v755 = vpack.c.b16 %v745, %v744
    %v756 = vpack.c.b16 %v747, %v746
    %v757 = vpack.c.b16 %v749, %v748
    %766 = vmatpush.bf16.msra.mxu0 %v757
    %767 = vmatpush.bf16.msra.mxu0 %v756
    %768 = vmatpush.bf16.msra.mxu0 %v755
    %769 = vmatpush.bf16.msra.mxu0 %v754
    %770 = vmatpush.bf16.msra.mxu0 %v753
    %771 = vmatpush.bf16.msra.mxu0 %v752
    %772 = vmatpush.bf16.msra.mxu0 %v751
    %773 = vmatpush.bf16.msra.mxu0 %v750
    %774 = vmatmul.bf16.gmra.mxu0 %v612
    %v775 = vpop.f32.mrf.mxu0
    %v776 = vadd.f32 %v716, %v775
    %v777 = vpop.f32.mrf.mxu0
    %778 = vdwg.mxu0
    %s779 = scalar_lea.vmem [#allocation10], 320
    %v780 = vld [vmem:[%s779] sm:$0xf]
    %v781 = vld [vmem:[%s779 + $0x4] sm:$0xf]
    %v782 = vld [vmem:[%s779 + $0x8] sm:$0xf]
    %v783 = vld [vmem:[%s779 + $0xc] sm:$0xf]
    %v784 = vld [vmem:[%s779 + $0x10] sm:$0xf]
    %v785 = vld [vmem:[%s779 + $0x14] sm:$0xf]
    %v786 = vld [vmem:[%s779 + $0x18] sm:$0xf]
    %v787 = vld [vmem:[%s779 + $0x1c] sm:$0xf]
    %v788 = vld [vmem:[%s779 + $0x20] sm:$0xf]
    %v789 = vld [vmem:[%s779 + $0x24] sm:$0xf]
    %v790 = vld [vmem:[%s779 + $0x28] sm:$0xf]
    %v791 = vld [vmem:[%s779 + $0x2c] sm:$0xf]
    %v792 = vld [vmem:[%s779 + $0x30] sm:$0xf]
    %v793 = vld [vmem:[%s779 + $0x34] sm:$0xf]
    %v794 = vld [vmem:[%s779 + $0x38] sm:$0xf]
    %v795 = vld [vmem:[%s779 + $0x3c] sm:$0xf]
    %s796 = scalar_lea.vmem [#allocation11], 5
    %v797 = vld [vmem:[%s796] sm:$0x1]
    %v799 = vperm.slane %v797, 0
    %v817 = vunpack.c.l.b16 %v780
    %v818 = vunpack.c.l.b16 %v781
    %v819 = vunpack.c.l.b16 %v782
    %v820 = vunpack.c.l.b16 %v783
    %v821 = vunpack.c.l.b16 %v784
    %v822 = vunpack.c.l.b16 %v785
    %v823 = vunpack.c.l.b16 %v786
    %v824 = vunpack.c.l.b16 %v787
    %v825 = vunpack.c.l.b16 %v788
    %v826 = vunpack.c.l.b16 %v789
    %v827 = vunpack.c.l.b16 %v790
    %v828 = vunpack.c.l.b16 %v791
    %v829 = vunpack.c.l.b16 %v792
    %v830 = vunpack.c.l.b16 %v793
    %v831 = vunpack.c.l.b16 %v794
    %v832 = vunpack.c.l.b16 %v795
    %v833 = vpack.c.b16 %v818, %v817
    %v834 = vpack.c.b16 %v820, %v819
    %v835 = vpack.c.b16 %v822, %v821
    %v836 = vpack.c.b16 %v824, %v823
    %v837 = vpack.c.b16 %v826, %v825
    %v838 = vpack.c.b16 %v828, %v827
    %v839 = vpack.c.b16 %v830, %v829
    %v840 = vpack.c.b16 %v832, %v831
    %849 = vmatpush.bf16.msra.mxu0 %v840
    %850 = vmatpush.bf16.msra.mxu0 %v839
    %851 = vmatpush.bf16.msra.mxu0 %v838
    %852 = vmatpush.bf16.msra.mxu0 %v837
    %853 = vmatpush.bf16.msra.mxu0 %v836
    %854 = vmatpush.bf16.msra.mxu0 %v835
    %855 = vmatpush.bf16.msra.mxu0 %v834
    %856 = vmatpush.bf16.msra.mxu0 %v833
    %857 = vmatmul.bf16.gmra.mxu0 %v612
    %v858 = vpop.f32.mrf.mxu0
    %v859 = vadd.f32 %v799, %v858
    %v860 = vpop.f32.mrf.mxu0
    %861 = vdwg.mxu0
    %s862 = scalar_lea.vmem [#allocation7], 128
    %v863 = vld [vmem:[%s862] sm:$0xf]
    %v864 = vld [vmem:[%s862 + $0x4] sm:$0xf]
    %v865 = vld [vmem:[%s862 + $0x8] sm:$0xf]
    %v866 = vld [vmem:[%s862 + $0xc] sm:$0xf]
    %v867 = vld [vmem:[%s862 + $0x10] sm:$0xf]
    %v868 = vld [vmem:[%s862 + $0x14] sm:$0xf]
    %v869 = vld [vmem:[%s862 + $0x18] sm:$0xf]
    %v870 = vld [vmem:[%s862 + $0x1c] sm:$0xf]
    %v871 = vld [vmem:[%s862 + $0x20] sm:$0xf]
    %v872 = vld [vmem:[%s862 + $0x24] sm:$0xf]
    %v873 = vld [vmem:[%s862 + $0x28] sm:$0xf]
    %v874 = vld [vmem:[%s862 + $0x2c] sm:$0xf]
    %v875 = vld [vmem:[%s862 + $0x30] sm:$0xf]
    %v876 = vld [vmem:[%s862 + $0x34] sm:$0xf]
    %v877 = vld [vmem:[%s862 + $0x38] sm:$0xf]
    %v878 = vld [vmem:[%s862 + $0x3c] sm:$0xf]
    %s879 = scalar_lea.vmem [#allocation8], 2
    %v880 = vld [vmem:[%s879] sm:$0x1]
    %v882 = vperm.slane %v880, 0
    %v900 = vunpack.c.l.b16 %v863
    %v901 = vunpack.c.l.b16 %v864
    %v902 = vunpack.c.l.b16 %v865
    %v903 = vunpack.c.l.b16 %v866
    %v904 = vunpack.c.l.b16 %v867
    %v905 = vunpack.c.l.b16 %v868
    %v906 = vunpack.c.l.b16 %v869
    %v907 = vunpack.c.l.b16 %v870
    %v908 = vunpack.c.l.b16 %v871
    %v909 = vunpack.c.l.b16 %v872
    %v910 = vunpack.c.l.b16 %v873
    %v911 = vunpack.c.l.b16 %v874
    %v912 = vunpack.c.l.b16 %v875
    %v913 = vunpack.c.l.b16 %v876
    %v914 = vunpack.c.l.b16 %v877
    %v915 = vunpack.c.l.b16 %v878
    %v916 = vpack.c.b16 %v901, %v900
    %v917 = vpack.c.b16 %v903, %v902
    %v918 = vpack.c.b16 %v905, %v904
    %v919 = vpack.c.b16 %v907, %v906
    %v920 = vpack.c.b16 %v909, %v908
    %v921 = vpack.c.b16 %v911, %v910
    %v922 = vpack.c.b16 %v913, %v912
    %v923 = vpack.c.b16 %v915, %v914
    %932 = vmatpush.bf16.msra.mxu0 %v923
    %933 = vmatpush.bf16.msra.mxu0 %v922
    %934 = vmatpush.bf16.msra.mxu0 %v921
    %935 = vmatpush.bf16.msra.mxu0 %v920
    %936 = vmatpush.bf16.msra.mxu0 %v919
    %937 = vmatpush.bf16.msra.mxu0 %v918
    %938 = vmatpush.bf16.msra.mxu0 %v917
    %939 = vmatpush.bf16.msra.mxu0 %v916
    %940 = vmatmul.bf16.gmra.mxu0 %v159
    %v941 = vpop.f32.mrf.mxu0
    %v942 = vadd.f32 %v882, %v941
    %v943 = vpop.f32.mrf.mxu0
    %944 = vdwg.mxu0
    %v945 = vxor.u32 %v942, 2147483648
    %v946 = vmul.f32 %v945, 1.442695
    %v947 = vpow.pop %v946
    %v948 = vadd.f32 %v947, 1.0
    %v949 = vrcp.pop %v948
    %v950 = vmul.f32 %v948, %v949
    %v951 = vsub.f32 1.0, %v950
    %v952 = vmul.f32 %v949, %v951
    %v953 = vadd.f32 %v949, %v952
    %vm954 = vweird.f32 %v948
    %vm955 = vweird.f32 %v949
    %vm956 = vmor %vm954, %vm955
    %v957 = vsel %vm956, %v949, %v953
    %v958 = vand.u32 2147483647, %v948
    %vm959 = vcmp.eq.f32.partialorder %v958, 8.507059e+37
    %v960 = vand.u32 %v948, 2147483648
    %v961 = vor.u32 1.1754944e-38, %v960
    %v962 = vsel %vm959, %v961, %v957
    %v963 = vmul.f32 1.0, %v962
    %v964 = vmul.f32 %v942, %v963
    %v965 = vpack.c.bf16 %v964, %v964
    %s966 = scalar_lea.vmem [#allocation10], 384
    %v967 = vld [vmem:[%s966] sm:$0xf]
    %v968 = vld [vmem:[%s966 + $0x4] sm:$0xf]
    %v969 = vld [vmem:[%s966 + $0x8] sm:$0xf]
    %v970 = vld [vmem:[%s966 + $0xc] sm:$0xf]
    %v971 = vld [vmem:[%s966 + $0x10] sm:$0xf]
    %v972 = vld [vmem:[%s966 + $0x14] sm:$0xf]
    %v973 = vld [vmem:[%s966 + $0x18] sm:$0xf]
    %v974 = vld [vmem:[%s966 + $0x1c] sm:$0xf]
    %v975 = vld [vmem:[%s966 + $0x20] sm:$0xf]
    %v976 = vld [vmem:[%s966 + $0x24] sm:$0xf]
    %v977 = vld [vmem:[%s966 + $0x28] sm:$0xf]
    %v978 = vld [vmem:[%s966 + $0x2c] sm:$0xf]
    %v979 = vld [vmem:[%s966 + $0x30] sm:$0xf]
    %v980 = vld [vmem:[%s966 + $0x34] sm:$0xf]
    %v981 = vld [vmem:[%s966 + $0x38] sm:$0xf]
    %v982 = vld [vmem:[%s966 + $0x3c] sm:$0xf]
    %s983 = scalar_lea.vmem [#allocation11], 6
    %v984 = vld [vmem:[%s983] sm:$0x1]
    %v986 = vperm.slane %v984, 0
    %v1004 = vunpack.c.l.b16 %v967
    %v1005 = vunpack.c.l.b16 %v968
    %v1006 = vunpack.c.l.b16 %v969
    %v1007 = vunpack.c.l.b16 %v970
    %v1008 = vunpack.c.l.b16 %v971
    %v1009 = vunpack.c.l.b16 %v972
    %v1010 = vunpack.c.l.b16 %v973
    %v1011 = vunpack.c.l.b16 %v974
    %v1012 = vunpack.c.l.b16 %v975
    %v1013 = vunpack.c.l.b16 %v976
    %v1014 = vunpack.c.l.b16 %v977
    %v1015 = vunpack.c.l.b16 %v978
    %v1016 = vunpack.c.l.b16 %v979
    %v1017 = vunpack.c.l.b16 %v980
    %v1018 = vunpack.c.l.b16 %v981
    %v1019 = vunpack.c.l.b16 %v982
    %v1020 = vpack.c.b16 %v1005, %v1004
    %v1021 = vpack.c.b16 %v1007, %v1006
    %v1022 = vpack.c.b16 %v1009, %v1008
    %v1023 = vpack.c.b16 %v1011, %v1010
    %v1024 = vpack.c.b16 %v1013, %v1012
    %v1025 = vpack.c.b16 %v1015, %v1014
    %v1026 = vpack.c.b16 %v1017, %v1016
    %v1027 = vpack.c.b16 %v1019, %v1018
    %1036 = vmatpush.bf16.msra.mxu0 %v1027
    %1037 = vmatpush.bf16.msra.mxu0 %v1026
    %1038 = vmatpush.bf16.msra.mxu0 %v1025
    %1039 = vmatpush.bf16.msra.mxu0 %v1024
    %1040 = vmatpush.bf16.msra.mxu0 %v1023
    %1041 = vmatpush.bf16.msra.mxu0 %v1022
    %1042 = vmatpush.bf16.msra.mxu0 %v1021
    %1043 = vmatpush.bf16.msra.mxu0 %v1020
    %1044 = vmatmul.bf16.gmra.mxu0 %v965
    %v1045 = vpop.f32.mrf.mxu0
    %v1046 = vadd.f32 %v986, %v1045
    %v1047 = vpop.f32.mrf.mxu0
    %1048 = vdwg.mxu0
    %s1049 = scalar_lea.vmem [#allocation10], 448
    %v1050 = vld [vmem:[%s1049] sm:$0xf]
    %v1051 = vld [vmem:[%s1049 + $0x4] sm:$0xf]
    %v1052 = vld [vmem:[%s1049 + $0x8] sm:$0xf]
    %v1053 = vld [vmem:[%s1049 + $0xc] sm:$0xf]
    %v1054 = vld [vmem:[%s1049 + $0x10] sm:$0xf]
    %v1055 = vld [vmem:[%s1049 + $0x14] sm:$0xf]
    %v1056 = vld [vmem:[%s1049 + $0x18] sm:$0xf]
    %v1057 = vld [vmem:[%s1049 + $0x1c] sm:$0xf]
    %v1058 = vld [vmem:[%s1049 + $0x20] sm:$0xf]
    %v1059 = vld [vmem:[%s1049 + $0x24] sm:$0xf]
    %v1060 = vld [vmem:[%s1049 + $0x28] sm:$0xf]
    %v1061 = vld [vmem:[%s1049 + $0x2c] sm:$0xf]
    %v1062 = vld [vmem:[%s1049 + $0x30] sm:$0xf]
    %v1063 = vld [vmem:[%s1049 + $0x34] sm:$0xf]
    %v1064 = vld [vmem:[%s1049 + $0x38] sm:$0xf]
    %v1065 = vld [vmem:[%s1049 + $0x3c] sm:$0xf]
    %s1066 = scalar_lea.vmem [#allocation11], 7
    %v1067 = vld [vmem:[%s1066] sm:$0x1]
    %v1069 = vperm.slane %v1067, 0
    %v1087 = vunpack.c.l.b16 %v1050
    %v1088 = vunpack.c.l.b16 %v1051
    %v1089 = vunpack.c.l.b16 %v1052
    %v1090 = vunpack.c.l.b16 %v1053
    %v1091 = vunpack.c.l.b16 %v1054
    %v1092 = vunpack.c.l.b16 %v1055
    %v1093 = vunpack.c.l.b16 %v1056
    %v1094 = vunpack.c.l.b16 %v1057
    %v1095 = vunpack.c.l.b16 %v1058
    %v1096 = vunpack.c.l.b16 %v1059
    %v1097 = vunpack.c.l.b16 %v1060
    %v1098 = vunpack.c.l.b16 %v1061
    %v1099 = vunpack.c.l.b16 %v1062
    %v1100 = vunpack.c.l.b16 %v1063
    %v1101 = vunpack.c.l.b16 %v1064
    %v1102 = vunpack.c.l.b16 %v1065
    %v1103 = vpack.c.b16 %v1088, %v1087
    %v1104 = vpack.c.b16 %v1090, %v1089
    %v1105 = vpack.c.b16 %v1092, %v1091
    %v1106 = vpack.c.b16 %v1094, %v1093
    %v1107 = vpack.c.b16 %v1096, %v1095
    %v1108 = vpack.c.b16 %v1098, %v1097
    %v1109 = vpack.c.b16 %v1100, %v1099
    %v1110 = vpack.c.b16 %v1102, %v1101
    %1119 = vmatpush.bf16.msra.mxu0 %v1110
    %1120 = vmatpush.bf16.msra.mxu0 %v1109
    %1121 = vmatpush.bf16.msra.mxu0 %v1108
    %1122 = vmatpush.bf16.msra.mxu0 %v1107
    %1123 = vmatpush.bf16.msra.mxu0 %v1106
    %1124 = vmatpush.bf16.msra.mxu0 %v1105
    %1125 = vmatpush.bf16.msra.mxu0 %v1104
    %1126 = vmatpush.bf16.msra.mxu0 %v1103
    %1127 = vmatmul.bf16.gmra.mxu0 %v965
    %v1128 = vpop.f32.mrf.mxu0
    %v1129 = vadd.f32 %v1069, %v1128
    %v1130 = vpop.f32.mrf.mxu0
    %1131 = vdwg.mxu0
    %s1132 = scalar_lea.vmem [#allocation10], 512
    %v1133 = vld [vmem:[%s1132] sm:$0xf]
    %v1134 = vld [vmem:[%s1132 + $0x4] sm:$0xf]
    %v1135 = vld [vmem:[%s1132 + $0x8] sm:$0xf]
    %v1136 = vld [vmem:[%s1132 + $0xc] sm:$0xf]
    %v1137 = vld [vmem:[%s1132 + $0x10] sm:$0xf]
    %v1138 = vld [vmem:[%s1132 + $0x14] sm:$0xf]
    %v1139 = vld [vmem:[%s1132 + $0x18] sm:$0xf]
    %v1140 = vld [vmem:[%s1132 + $0x1c] sm:$0xf]
    %v1141 = vld [vmem:[%s1132 + $0x20] sm:$0xf]
    %v1142 = vld [vmem:[%s1132 + $0x24] sm:$0xf]
    %v1143 = vld [vmem:[%s1132 + $0x28] sm:$0xf]
    %v1144 = vld [vmem:[%s1132 + $0x2c] sm:$0xf]
    %v1145 = vld [vmem:[%s1132 + $0x30] sm:$0xf]
    %v1146 = vld [vmem:[%s1132 + $0x34] sm:$0xf]
    %v1147 = vld [vmem:[%s1132 + $0x38] sm:$0xf]
    %v1148 = vld [vmem:[%s1132 + $0x3c] sm:$0xf]
    %s1149 = scalar_lea.vmem [#allocation11], 8
    %v1150 = vld [vmem:[%s1149] sm:$0x1]
    %v1152 = vperm.slane %v1150, 0
    %v1170 = vunpack.c.l.b16 %v1133
    %v1171 = vunpack.c.l.b16 %v1134
    %v1172 = vunpack.c.l.b16 %v1135
    %v1173 = vunpack.c.l.b16 %v1136
    %v1174 = vunpack.c.l.b16 %v1137
    %v1175 = vunpack.c.l.b16 %v1138
    %v1176 = vunpack.c.l.b16 %v1139
    %v1177 = vunpack.c.l.b16 %v1140
    %v1178 = vunpack.c.l.b16 %v1141
    %v1179 = vunpack.c.l.b16 %v1142
    %v1180 = vunpack.c.l.b16 %v1143
    %v1181 = vunpack.c.l.b16 %v1144
    %v1182 = vunpack.c.l.b16 %v1145
    %v1183 = vunpack.c.l.b16 %v1146
    %v1184 = vunpack.c.l.b16 %v1147
    %v1185 = vunpack.c.l.b16 %v1148
    %v1186 = vpack.c.b16 %v1171, %v1170
    %v1187 = vpack.c.b16 %v1173, %v1172
    %v1188 = vpack.c.b16 %v1175, %v1174
    %v1189 = vpack.c.b16 %v1177, %v1176
    %v1190 = vpack.c.b16 %v1179, %v1178
    %v1191 = vpack.c.b16 %v1181, %v1180
    %v1192 = vpack.c.b16 %v1183, %v1182
    %v1193 = vpack.c.b16 %v1185, %v1184
    %1202 = vmatpush.bf16.msra.mxu0 %v1193
    %1203 = vmatpush.bf16.msra.mxu0 %v1192
    %1204 = vmatpush.bf16.msra.mxu0 %v1191
    %1205 = vmatpush.bf16.msra.mxu0 %v1190
    %1206 = vmatpush.bf16.msra.mxu0 %v1189
    %1207 = vmatpush.bf16.msra.mxu0 %v1188
    %1208 = vmatpush.bf16.msra.mxu0 %v1187
    %1209 = vmatpush.bf16.msra.mxu0 %v1186
    %1210 = vmatmul.bf16.gmra.mxu0 %v965
    %v1211 = vpop.f32.mrf.mxu0
    %v1212 = vadd.f32 %v1152, %v1211
    %v1213 = vpop.f32.mrf.mxu0
    %1214 = vdwg.mxu0
    %s1215 = scalar_lea.vmem [#allocation7], 192
    %v1216 = vld [vmem:[%s1215] sm:$0xf]
    %v1217 = vld [vmem:[%s1215 + $0x4] sm:$0xf]
    %v1218 = vld [vmem:[%s1215 + $0x8] sm:$0xf]
    %v1219 = vld [vmem:[%s1215 + $0xc] sm:$0xf]
    %v1220 = vld [vmem:[%s1215 + $0x10] sm:$0xf]
    %v1221 = vld [vmem:[%s1215 + $0x14] sm:$0xf]
    %v1222 = vld [vmem:[%s1215 + $0x18] sm:$0xf]
    %v1223 = vld [vmem:[%s1215 + $0x1c] sm:$0xf]
    %v1224 = vld [vmem:[%s1215 + $0x20] sm:$0xf]
    %v1225 = vld [vmem:[%s1215 + $0x24] sm:$0xf]
    %v1226 = vld [vmem:[%s1215 + $0x28] sm:$0xf]
    %v1227 = vld [vmem:[%s1215 + $0x2c] sm:$0xf]
    %v1228 = vld [vmem:[%s1215 + $0x30] sm:$0xf]
    %v1229 = vld [vmem:[%s1215 + $0x34] sm:$0xf]
    %v1230 = vld [vmem:[%s1215 + $0x38] sm:$0xf]
    %v1231 = vld [vmem:[%s1215 + $0x3c] sm:$0xf]
    %s1232 = scalar_lea.vmem [#allocation8], 3
    %v1233 = vld [vmem:[%s1232] sm:$0x1]
    %v1235 = vperm.slane %v1233, 0
    %v1253 = vunpack.c.l.b16 %v1216
    %v1254 = vunpack.c.l.b16 %v1217
    %v1255 = vunpack.c.l.b16 %v1218
    %v1256 = vunpack.c.l.b16 %v1219
    %v1257 = vunpack.c.l.b16 %v1220
    %v1258 = vunpack.c.l.b16 %v1221
    %v1259 = vunpack.c.l.b16 %v1222
    %v1260 = vunpack.c.l.b16 %v1223
    %v1261 = vunpack.c.l.b16 %v1224
    %v1262 = vunpack.c.l.b16 %v1225
    %v1263 = vunpack.c.l.b16 %v1226
    %v1264 = vunpack.c.l.b16 %v1227
    %v1265 = vunpack.c.l.b16 %v1228
    %v1266 = vunpack.c.l.b16 %v1229
    %v1267 = vunpack.c.l.b16 %v1230
    %v1268 = vunpack.c.l.b16 %v1231
    %v1269 = vpack.c.b16 %v1254, %v1253
    %v1270 = vpack.c.b16 %v1256, %v1255
    %v1271 = vpack.c.b16 %v1258, %v1257
    %v1272 = vpack.c.b16 %v1260, %v1259
    %v1273 = vpack.c.b16 %v1262, %v1261
    %v1274 = vpack.c.b16 %v1264, %v1263
    %v1275 = vpack.c.b16 %v1266, %v1265
    %v1276 = vpack.c.b16 %v1268, %v1267
    %1285 = vmatpush.bf16.msra.mxu0 %v1276
    %1286 = vmatpush.bf16.msra.mxu0 %v1275
    %1287 = vmatpush.bf16.msra.mxu0 %v1274
    %1288 = vmatpush.bf16.msra.mxu0 %v1273
    %1289 = vmatpush.bf16.msra.mxu0 %v1272
    %1290 = vmatpush.bf16.msra.mxu0 %v1271
    %1291 = vmatpush.bf16.msra.mxu0 %v1270
    %1292 = vmatpush.bf16.msra.mxu0 %v1269
    %1293 = vmatmul.bf16.gmra.mxu0 %v159
    %v1294 = vpop.f32.mrf.mxu0
    %v1295 = vadd.f32 %v1235, %v1294
    %v1296 = vpop.f32.mrf.mxu0
    %1297 = vdwg.mxu0
    %v1298 = vxor.u32 %v1295, 2147483648
    %v1299 = vmul.f32 %v1298, 1.442695
    %v1300 = vpow.pop %v1299
    %v1301 = vadd.f32 %v1300, 1.0
    %v1302 = vrcp.pop %v1301
    %v1303 = vmul.f32 %v1301, %v1302
    %v1304 = vsub.f32 1.0, %v1303
    %v1305 = vmul.f32 %v1302, %v1304
    %v1306 = vadd.f32 %v1302, %v1305
    %vm1307 = vweird.f32 %v1301
    %vm1308 = vweird.f32 %v1302
    %vm1309 = vmor %vm1307, %vm1308
    %v1310 = vsel %vm1309, %v1302, %v1306
    %v1311 = vand.u32 2147483647, %v1301
    %vm1312 = vcmp.eq.f32.partialorder %v1311, 8.507059e+37
    %v1313 = vand.u32 %v1301, 2147483648
    %v1314 = vor.u32 1.1754944e-38, %v1313
    %v1315 = vsel %vm1312, %v1314, %v1310
    %v1316 = vmul.f32 1.0, %v1315
    %v1317 = vmul.f32 %v1295, %v1316
    %v1318 = vpack.c.bf16 %v1317, %v1317
    %s1319 = scalar_lea.vmem [#allocation10], 576
    %v1320 = vld [vmem:[%s1319] sm:$0xf]
    %v1321 = vld [vmem:[%s1319 + $0x4] sm:$0xf]
    %v1322 = vld [vmem:[%s1319 + $0x8] sm:$0xf]
    %v1323 = vld [vmem:[%s1319 + $0xc] sm:$0xf]
    %v1324 = vld [vmem:[%s1319 + $0x10] sm:$0xf]
    %v1325 = vld [vmem:[%s1319 + $0x14] sm:$0xf]
    %v1326 = vld [vmem:[%s1319 + $0x18] sm:$0xf]
    %v1327 = vld [vmem:[%s1319 + $0x1c] sm:$0xf]
    %v1328 = vld [vmem:[%s1319 + $0x20] sm:$0xf]
    %v1329 = vld [vmem:[%s1319 + $0x24] sm:$0xf]
    %v1330 = vld [vmem:[%s1319 + $0x28] sm:$0xf]
    %v1331 = vld [vmem:[%s1319 + $0x2c] sm:$0xf]
    %v1332 = vld [vmem:[%s1319 + $0x30] sm:$0xf]
    %v1333 = vld [vmem:[%s1319 + $0x34] sm:$0xf]
    %v1334 = vld [vmem:[%s1319 + $0x38] sm:$0xf]
    %v1335 = vld [vmem:[%s1319 + $0x3c] sm:$0xf]
    %s1336 = scalar_lea.vmem [#allocation11], 9
    %v1337 = vld [vmem:[%s1336] sm:$0x1]
    %v1339 = vperm.slane %v1337, 0
    %v1357 = vunpack.c.l.b16 %v1320
    %v1358 = vunpack.c.l.b16 %v1321
    %v1359 = vunpack.c.l.b16 %v1322
    %v1360 = vunpack.c.l.b16 %v1323
    %v1361 = vunpack.c.l.b16 %v1324
    %v1362 = vunpack.c.l.b16 %v1325
    %v1363 = vunpack.c.l.b16 %v1326
    %v1364 = vunpack.c.l.b16 %v1327
    %v1365 = vunpack.c.l.b16 %v1328
    %v1366 = vunpack.c.l.b16 %v1329
    %v1367 = vunpack.c.l.b16 %v1330
    %v1368 = vunpack.c.l.b16 %v1331
    %v1369 = vunpack.c.l.b16 %v1332
    %v1370 = vunpack.c.l.b16 %v1333
    %v1371 = vunpack.c.l.b16 %v1334
    %v1372 = vunpack.c.l.b16 %v1335
    %v1373 = vpack.c.b16 %v1358, %v1357
    %v1374 = vpack.c.b16 %v1360, %v1359
    %v1375 = vpack.c.b16 %v1362, %v1361
    %v1376 = vpack.c.b16 %v1364, %v1363
    %v1377 = vpack.c.b16 %v1366, %v1365
    %v1378 = vpack.c.b16 %v1368, %v1367
    %v1379 = vpack.c.b16 %v1370, %v1369
    %v1380 = vpack.c.b16 %v1372, %v1371
    %1389 = vmatpush.bf16.msra.mxu0 %v1380
    %1390 = vmatpush.bf16.msra.mxu0 %v1379
    %1391 = vmatpush.bf16.msra.mxu0 %v1378
    %1392 = vmatpush.bf16.msra.mxu0 %v1377
    %1393 = vmatpush.bf16.msra.mxu0 %v1376
    %1394 = vmatpush.bf16.msra.mxu0 %v1375
    %1395 = vmatpush.bf16.msra.mxu0 %v1374
    %1396 = vmatpush.bf16.msra.mxu0 %v1373
    %1397 = vmatmul.bf16.gmra.mxu0 %v1318
    %v1398 = vpop.f32.mrf.mxu0
    %v1399 = vadd.f32 %v1339, %v1398
    %v1400 = vpop.f32.mrf.mxu0
    %1401 = vdwg.mxu0
    %s1402 = scalar_lea.vmem [#allocation10], 640
    %v1403 = vld [vmem:[%s1402] sm:$0xf]
    %v1404 = vld [vmem:[%s1402 + $0x4] sm:$0xf]
    %v1405 = vld [vmem:[%s1402 + $0x8] sm:$0xf]
    %v1406 = vld [vmem:[%s1402 + $0xc] sm:$0xf]
    %v1407 = vld [vmem:[%s1402 + $0x10] sm:$0xf]
    %v1408 = vld [vmem:[%s1402 + $0x14] sm:$0xf]
    %v1409 = vld [vmem:[%s1402 + $0x18] sm:$0xf]
    %v1410 = vld [vmem:[%s1402 + $0x1c] sm:$0xf]
    %v1411 = vld [vmem:[%s1402 + $0x20] sm:$0xf]
    %v1412 = vld [vmem:[%s1402 + $0x24] sm:$0xf]
    %v1413 = vld [vmem:[%s1402 + $0x28] sm:$0xf]
    %v1414 = vld [vmem:[%s1402 + $0x2c] sm:$0xf]
    %v1415 = vld [vmem:[%s1402 + $0x30] sm:$0xf]
    %v1416 = vld [vmem:[%s1402 + $0x34] sm:$0xf]
    %v1417 = vld [vmem:[%s1402 + $0x38] sm:$0xf]
    %v1418 = vld [vmem:[%s1402 + $0x3c] sm:$0xf]
    %s1419 = scalar_lea.vmem [#allocation11], 10
    %v1420 = vld [vmem:[%s1419] sm:$0x1]
    %v1422 = vperm.slane %v1420, 0
    %v1440 = vunpack.c.l.b16 %v1403
    %v1441 = vunpack.c.l.b16 %v1404
    %v1442 = vunpack.c.l.b16 %v1405
    %v1443 = vunpack.c.l.b16 %v1406
    %v1444 = vunpack.c.l.b16 %v1407
    %v1445 = vunpack.c.l.b16 %v1408
    %v1446 = vunpack.c.l.b16 %v1409
    %v1447 = vunpack.c.l.b16 %v1410
    %v1448 = vunpack.c.l.b16 %v1411
    %v1449 = vunpack.c.l.b16 %v1412
    %v1450 = vunpack.c.l.b16 %v1413
    %v1451 = vunpack.c.l.b16 %v1414
    %v1452 = vunpack.c.l.b16 %v1415
    %v1453 = vunpack.c.l.b16 %v1416
    %v1454 = vunpack.c.l.b16 %v1417
    %v1455 = vunpack.c.l.b16 %v1418
    %v1456 = vpack.c.b16 %v1441, %v1440
    %v1457 = vpack.c.b16 %v1443, %v1442
    %v1458 = vpack.c.b16 %v1445, %v1444
    %v1459 = vpack.c.b16 %v1447, %v1446
    %v1460 = vpack.c.b16 %v1449, %v1448
    %v1461 = vpack.c.b16 %v1451, %v1450
    %v1462 = vpack.c.b16 %v1453, %v1452
    %v1463 = vpack.c.b16 %v1455, %v1454
    %1472 = vmatpush.bf16.msra.mxu0 %v1463
    %1473 = vmatpush.bf16.msra.mxu0 %v1462
    %1474 = vmatpush.bf16.msra.mxu0 %v1461
    %1475 = vmatpush.bf16.msra.mxu0 %v1460
    %1476 = vmatpush.bf16.msra.mxu0 %v1459
    %1477 = vmatpush.bf16.msra.mxu0 %v1458
    %1478 = vmatpush.bf16.msra.mxu0 %v1457
    %1479 = vmatpush.bf16.msra.mxu0 %v1456
    %1480 = vmatmul.bf16.gmra.mxu0 %v1318
    %v1481 = vpop.f32.mrf.mxu0
    %v1482 = vadd.f32 %v1422, %v1481
    %v1483 = vpop.f32.mrf.mxu0
    %1484 = vdwg.mxu0
    %s1485 = scalar_lea.vmem [#allocation10], 704
    %v1486 = vld [vmem:[%s1485] sm:$0xf]
    %v1487 = vld [vmem:[%s1485 + $0x4] sm:$0xf]
    %v1488 = vld [vmem:[%s1485 + $0x8] sm:$0xf]
    %v1489 = vld [vmem:[%s1485 + $0xc] sm:$0xf]
    %v1490 = vld [vmem:[%s1485 + $0x10] sm:$0xf]
    %v1491 = vld [vmem:[%s1485 + $0x14] sm:$0xf]
    %v1492 = vld [vmem:[%s1485 + $0x18] sm:$0xf]
    %v1493 = vld [vmem:[%s1485 + $0x1c] sm:$0xf]
    %v1494 = vld [vmem:[%s1485 + $0x20] sm:$0xf]
    %v1495 = vld [vmem:[%s1485 + $0x24] sm:$0xf]
    %v1496 = vld [vmem:[%s1485 + $0x28] sm:$0xf]
    %v1497 = vld [vmem:[%s1485 + $0x2c] sm:$0xf]
    %v1498 = vld [vmem:[%s1485 + $0x30] sm:$0xf]
    %v1499 = vld [vmem:[%s1485 + $0x34] sm:$0xf]
    %v1500 = vld [vmem:[%s1485 + $0x38] sm:$0xf]
    %v1501 = vld [vmem:[%s1485 + $0x3c] sm:$0xf]
    %s1502 = scalar_lea.vmem [#allocation11], 11
    %v1503 = vld [vmem:[%s1502] sm:$0x1]
    %v1505 = vperm.slane %v1503, 0
    %v1523 = vunpack.c.l.b16 %v1486
    %v1524 = vunpack.c.l.b16 %v1487
    %v1525 = vunpack.c.l.b16 %v1488
    %v1526 = vunpack.c.l.b16 %v1489
    %v1527 = vunpack.c.l.b16 %v1490
    %v1528 = vunpack.c.l.b16 %v1491
    %v1529 = vunpack.c.l.b16 %v1492
    %v1530 = vunpack.c.l.b16 %v1493
    %v1531 = vunpack.c.l.b16 %v1494
    %v1532 = vunpack.c.l.b16 %v1495
    %v1533 = vunpack.c.l.b16 %v1496
    %v1534 = vunpack.c.l.b16 %v1497
    %v1535 = vunpack.c.l.b16 %v1498
    %v1536 = vunpack.c.l.b16 %v1499
    %v1537 = vunpack.c.l.b16 %v1500
    %v1538 = vunpack.c.l.b16 %v1501
    %v1539 = vpack.c.b16 %v1524, %v1523
    %v1540 = vpack.c.b16 %v1526, %v1525
    %v1541 = vpack.c.b16 %v1528, %v1527
    %v1542 = vpack.c.b16 %v1530, %v1529
    %v1543 = vpack.c.b16 %v1532, %v1531
    %v1544 = vpack.c.b16 %v1534, %v1533
    %v1545 = vpack.c.b16 %v1536, %v1535
    %v1546 = vpack.c.b16 %v1538, %v1537
    %1555 = vmatpush.bf16.msra.mxu0 %v1546
    %1556 = vmatpush.bf16.msra.mxu0 %v1545
    %1557 = vmatpush.bf16.msra.mxu0 %v1544
    %1558 = vmatpush.bf16.msra.mxu0 %v1543
    %1559 = vmatpush.bf16.msra.mxu0 %v1542
    %1560 = vmatpush.bf16.msra.mxu0 %v1541
    %1561 = vmatpush.bf16.msra.mxu0 %v1540
    %1562 = vmatpush.bf16.msra.mxu0 %v1539
    %1563 = vmatmul.bf16.gmra.mxu0 %v1318
    %v1564 = vpop.f32.mrf.mxu0
    %v1565 = vadd.f32 %v1505, %v1564
    %v1566 = vpop.f32.mrf.mxu0
    %1567 = vdwg.mxu0
    %1568 = vadd.xlane.f32.xlu0 %v157
    %v1569 = vpop.xlane.xlu0 %1568
    %v1570 = vrcp.pop 128.0
    %v1571 = vmul.f32 128.0, %v1570
    %v1572 = vsub.f32 1.0, %v1571
    %v1573 = vmul.f32 %v1570, %v1572
    %v1574 = vadd.f32 %v1570, %v1573
    %vm1575 = vweird.f32 %v1570
    %v1576 = vsel %vm1575, %v1570, %v1574
    %v1577 = vmul.f32 %v1569, %v1576
    %v1578 = vsub.f32 %v157, %v1577
    %v1579 = vmul.f32 %v1578, %v1578
    %1580 = vadd.xlane.f32.xlu0 %v1579
    %v1581 = vpop.xlane.xlu0 %1580
    %v1582 = vmul.f32 %v1581, %v1576
    %v1583 = vadd.f32 %v1582, 1e-05
    %v1584 = vrsqrt.pop %v1583
    %v1585 = vmul.f32 %v1584, %v1583
    %v1586 = vmul.f32 %v1585, %v1584
    %v1587 = vmul.f32 0.5, %v1586
    %v1588 = vsub.f32 1.5, %v1587
    %v1589 = vmul.f32 %v1584, %v1588
    %vm1590 = vweird.f32 %v1583
    %vm1591 = vweird.f32 %v1584
    %vm1592 = vmor %vm1590, %vm1591
    %v1593 = vsel %vm1592, %v1584, %v1589
    %v1594 = vmul.f32 %v1578, %v1593
    %v1595 = vmul.f32 %v340, %v1594
    %v1596 = vadd.f32 %v1595, %v423
    %v1597 = vpack.c.bf16 %v1596, %v1596
    %v1598 = vld [vmem:[#allocation13] sm:$0xf]
    %v1599 = vld [vmem:[#allocation13 + $0x4] sm:$0xf]
    %v1600 = vld [vmem:[#allocation13 + $0x8] sm:$0xf]
    %v1601 = vld [vmem:[#allocation13 + $0xc] sm:$0xf]
    %v1602 = vld [vmem:[#allocation13 + $0x10] sm:$0xf]
    %v1603 = vld [vmem:[#allocation13 + $0x14] sm:$0xf]
    %v1604 = vld [vmem:[#allocation13 + $0x18] sm:$0xf]
    %v1605 = vld [vmem:[#allocation13 + $0x1c] sm:$0xf]
    %v1606 = vld [vmem:[#allocation13 + $0x20] sm:$0xf]
    %v1607 = vld [vmem:[#allocation13 + $0x24] sm:$0xf]
    %v1608 = vld [vmem:[#allocation13 + $0x28] sm:$0xf]
    %v1609 = vld [vmem:[#allocation13 + $0x2c] sm:$0xf]
    %v1610 = vld [vmem:[#allocation13 + $0x30] sm:$0xf]
    %v1611 = vld [vmem:[#allocation13 + $0x34] sm:$0xf]
    %v1612 = vld [vmem:[#allocation13 + $0x38] sm:$0xf]
    %v1613 = vld [vmem:[#allocation13 + $0x3c] sm:$0xf]
    %v1614 = vld [vmem:[%s7] sm:$0x1]
    %v1616 = vperm.slane %v1614, 0
    %v1634 = vunpack.c.l.b16 %v1598
    %v1635 = vunpack.c.l.b16 %v1599
    %v1636 = vunpack.c.l.b16 %v1600
    %v1637 = vunpack.c.l.b16 %v1601
    %v1638 = vunpack.c.l.b16 %v1602
    %v1639 = vunpack.c.l.b16 %v1603
    %v1640 = vunpack.c.l.b16 %v1604
    %v1641 = vunpack.c.l.b16 %v1605
    %v1642 = vunpack.c.l.b16 %v1606
    %v1643 = vunpack.c.l.b16 %v1607
    %v1644 = vunpack.c.l.b16 %v1608
    %v1645 = vunpack.c.l.b16 %v1609
    %v1646 = vunpack.c.l.b16 %v1610
    %v1647 = vunpack.c.l.b16 %v1611
    %v1648 = vunpack.c.l.b16 %v1612
    %v1649 = vunpack.c.l.b16 %v1613
    %v1650 = vpack.c.b16 %v1635, %v1634
    %v1651 = vpack.c.b16 %v1637, %v1636
    %v1652 = vpack.c.b16 %v1639, %v1638
    %v1653 = vpack.c.b16 %v1641, %v1640
    %v1654 = vpack.c.b16 %v1643, %v1642
    %v1655 = vpack.c.b16 %v1645, %v1644
    %v1656 = vpack.c.b16 %v1647, %v1646
    %v1657 = vpack.c.b16 %v1649, %v1648
    %1666 = vmatpush.bf16.msra.mxu0 %v1657
    %1667 = vmatpush.bf16.msra.mxu0 %v1656
    %1668 = vmatpush.bf16.msra.mxu0 %v1655
    %1669 = vmatpush.bf16.msra.mxu0 %v1654
    %1670 = vmatpush.bf16.msra.mxu0 %v1653
    %1671 = vmatpush.bf16.msra.mxu0 %v1652
    %1672 = vmatpush.bf16.msra.mxu0 %v1651
    %1673 = vmatpush.bf16.msra.mxu0 %v1650
    %1674 = vmatmul.bf16.gmra.mxu0 %v1597
    %v1675 = vpop.f32.mrf.mxu0
    %v1676 = vadd.f32 %v1616, %v1675
    %v1677 = vpop.f32.mrf.mxu0
    %1678 = vdwg.mxu0
    %v1679 = vxor.u32 %v1676, 2147483648
    %v1680 = vmul.f32 %v1679, 1.442695
    %v1681 = vpow.pop %v1680
    %v1682 = vadd.f32 %v1681, 1.0
    %v1683 = vrcp.pop %v1682
    %v1684 = vmul.f32 %v1682, %v1683
    %v1685 = vsub.f32 1.0, %v1684
    %v1686 = vmul.f32 %v1683, %v1685
    %v1687 = vadd.f32 %v1683, %v1686
    %vm1688 = vweird.f32 %v1682
    %vm1689 = vweird.f32 %v1683
    %vm1690 = vmor %vm1688, %vm1689
    %v1691 = vsel %vm1690, %v1683, %v1687
    %v1692 = vand.u32 2147483647, %v1682
    %vm1693 = vcmp.eq.f32.partialorder %v1692, 8.507059e+37
    %v1694 = vand.u32 %v1682, 2147483648
    %v1695 = vor.u32 1.1754944e-38, %v1694
    %v1696 = vsel %vm1693, %v1695, %v1691
    %v1697 = vmul.f32 1.0, %v1696
    %v1698 = vmul.f32 %v1676, %v1697
    %v1699 = vpack.c.bf16 %v1698, %v1698
    %v1700 = vld [vmem:[#allocation14] sm:$0xf]
    %v1701 = vld [vmem:[#allocation14 + $0x4] sm:$0xf]
    %v1702 = vld [vmem:[#allocation14 + $0x8] sm:$0xf]
    %v1703 = vld [vmem:[#allocation14 + $0xc] sm:$0xf]
    %v1704 = vld [vmem:[#allocation14 + $0x10] sm:$0xf]
    %v1705 = vld [vmem:[#allocation14 + $0x14] sm:$0xf]
    %v1706 = vld [vmem:[#allocation14 + $0x18] sm:$0xf]
    %v1707 = vld [vmem:[#allocation14 + $0x1c] sm:$0xf]
    %v1708 = vld [vmem:[#allocation14 + $0x20] sm:$0xf]
    %v1709 = vld [vmem:[#allocation14 + $0x24] sm:$0xf]
    %v1710 = vld [vmem:[#allocation14 + $0x28] sm:$0xf]
    %v1711 = vld [vmem:[#allocation14 + $0x2c] sm:$0xf]
    %v1712 = vld [vmem:[#allocation14 + $0x30] sm:$0xf]
    %v1713 = vld [vmem:[#allocation14 + $0x34] sm:$0xf]
    %v1714 = vld [vmem:[#allocation14 + $0x38] sm:$0xf]
    %v1715 = vld [vmem:[#allocation14 + $0x3c] sm:$0xf]
    %v1716 = vld [vmem:[%s9] sm:$0x1]
    %v1718 = vperm.slane %v1716, 0
    %v1736 = vunpack.c.l.b16 %v1700
    %v1737 = vunpack.c.l.b16 %v1701
    %v1738 = vunpack.c.l.b16 %v1702
    %v1739 = vunpack.c.l.b16 %v1703
    %v1740 = vunpack.c.l.b16 %v1704
    %v1741 = vunpack.c.l.b16 %v1705
    %v1742 = vunpack.c.l.b16 %v1706
    %v1743 = vunpack.c.l.b16 %v1707
    %v1744 = vunpack.c.l.b16 %v1708
    %v1745 = vunpack.c.l.b16 %v1709
    %v1746 = vunpack.c.l.b16 %v1710
    %v1747 = vunpack.c.l.b16 %v1711
    %v1748 = vunpack.c.l.b16 %v1712
    %v1749 = vunpack.c.l.b16 %v1713
    %v1750 = vunpack.c.l.b16 %v1714
    %v1751 = vunpack.c.l.b16 %v1715
    %v1752 = vpack.c.b16 %v1737, %v1736
    %v1753 = vpack.c.b16 %v1739, %v1738
    %v1754 = vpack.c.b16 %v1741, %v1740
    %v1755 = vpack.c.b16 %v1743, %v1742
    %v1756 = vpack.c.b16 %v1745, %v1744
    %v1757 = vpack.c.b16 %v1747, %v1746
    %v1758 = vpack.c.b16 %v1749, %v1748
    %v1759 = vpack.c.b16 %v1751, %v1750
    %1768 = vmatpush.bf16.msra.mxu0 %v1759
    %1769 = vmatpush.bf16.msra.mxu0 %v1758
    %1770 = vmatpush.bf16.msra.mxu0 %v1757
    %1771 = vmatpush.bf16.msra.mxu0 %v1756
    %1772 = vmatpush.bf16.msra.mxu0 %v1755
    %1773 = vmatpush.bf16.msra.mxu0 %v1754
    %1774 = vmatpush.bf16.msra.mxu0 %v1753
    %1775 = vmatpush.bf16.msra.mxu0 %v1752
    %1776 = vmatmul.bf16.gmra.mxu0 %v1699
    %v1777 = vpop.f32.mrf.mxu0
    %v1778 = vadd.f32 %v1718, %v1777
    %v1779 = vpop.f32.mrf.mxu0
    %1780 = vdwg.mxu0
    %v1781 = vmul.f32 %v1778, %v506
    %v1782 = vmul.f32 %v1781, 0.25
    %v1783 = vadd.f32 %v1782, %v157
    %1784 = vadd.xlane.f32.xlu0 %v1783
    %v1785 = vpop.xlane.xlu0 %1784
    %v1786 = vmul.f32 %v1785, %v1576
    %v1787 = vsub.f32 %v1783, %v1786
    %v1788 = vmul.f32 %v1787, %v1787
    %1789 = vadd.xlane.f32.xlu0 %v1788
    %v1790 = vpop.xlane.xlu0 %1789
    %v1791 = vmul.f32 %v1790, %v1576
    %v1792 = vadd.f32 %v1791, 1e-05
    %v1793 = vrsqrt.pop %v1792
    %v1794 = vmul.f32 %v1793, %v1792
    %v1795 = vmul.f32 %v1794, %v1793
    %v1796 = vmul.f32 0.5, %v1795
    %v1797 = vsub.f32 1.5, %v1796
    %v1798 = vmul.f32 %v1793, %v1797
    %vm1799 = vweird.f32 %v1792
    %vm1800 = vweird.f32 %v1793
    %vm1801 = vmor %vm1799, %vm1800
    %v1802 = vsel %vm1801, %v1793, %v1798
    %v1803 = vmul.f32 %v1787, %v1802
    %v1804 = vmul.f32 %v693, %v1803
    %v1805 = vadd.f32 %v1804, %v776
    %v1806 = vpack.c.bf16 %v1805, %v1805
    %s1807 = scalar_lea.vmem [#allocation13], 64
    %v1808 = vld [vmem:[%s1807] sm:$0xf]
    %v1809 = vld [vmem:[%s1807 + $0x4] sm:$0xf]
    %v1810 = vld [vmem:[%s1807 + $0x8] sm:$0xf]
    %v1811 = vld [vmem:[%s1807 + $0xc] sm:$0xf]
    %v1812 = vld [vmem:[%s1807 + $0x10] sm:$0xf]
    %v1813 = vld [vmem:[%s1807 + $0x14] sm:$0xf]
    %v1814 = vld [vmem:[%s1807 + $0x18] sm:$0xf]
    %v1815 = vld [vmem:[%s1807 + $0x1c] sm:$0xf]
    %v1816 = vld [vmem:[%s1807 + $0x20] sm:$0xf]
    %v1817 = vld [vmem:[%s1807 + $0x24] sm:$0xf]
    %v1818 = vld [vmem:[%s1807 + $0x28] sm:$0xf]
    %v1819 = vld [vmem:[%s1807 + $0x2c] sm:$0xf]
    %v1820 = vld [vmem:[%s1807 + $0x30] sm:$0xf]
    %v1821 = vld [vmem:[%s1807 + $0x34] sm:$0xf]
    %v1822 = vld [vmem:[%s1807 + $0x38] sm:$0xf]
    %v1823 = vld [vmem:[%s1807 + $0x3c] sm:$0xf]
    %s1824 = scalar_lea.vmem %s7, 1
    %v1825 = vld [vmem:[%s1824] sm:$0x1]
    %v1827 = vperm.slane %v1825, 0
    %v1845 = vunpack.c.l.b16 %v1808
    %v1846 = vunpack.c.l.b16 %v1809
    %v1847 = vunpack.c.l.b16 %v1810
    %v1848 = vunpack.c.l.b16 %v1811
    %v1849 = vunpack.c.l.b16 %v1812
    %v1850 = vunpack.c.l.b16 %v1813
    %v1851 = vunpack.c.l.b16 %v1814
    %v1852 = vunpack.c.l.b16 %v1815
    %v1853 = vunpack.c.l.b16 %v1816
    %v1854 = vunpack.c.l.b16 %v1817
    %v1855 = vunpack.c.l.b16 %v1818
    %v1856 = vunpack.c.l.b16 %v1819
    %v1857 = vunpack.c.l.b16 %v1820
    %v1858 = vunpack.c.l.b16 %v1821
    %v1859 = vunpack.c.l.b16 %v1822
    %v1860 = vunpack.c.l.b16 %v1823
    %v1861 = vpack.c.b16 %v1846, %v1845
    %v1862 = vpack.c.b16 %v1848, %v1847
    %v1863 = vpack.c.b16 %v1850, %v1849
    %v1864 = vpack.c.b16 %v1852, %v1851
    %v1865 = vpack.c.b16 %v1854, %v1853
    %v1866 = vpack.c.b16 %v1856, %v1855
    %v1867 = vpack.c.b16 %v1858, %v1857
    %v1868 = vpack.c.b16 %v1860, %v1859
    %1877 = vmatpush.bf16.msra.mxu0 %v1868
    %1878 = vmatpush.bf16.msra.mxu0 %v1867
    %1879 = vmatpush.bf16.msra.mxu0 %v1866
    %1880 = vmatpush.bf16.msra.mxu0 %v1865
    %1881 = vmatpush.bf16.msra.mxu0 %v1864
    %1882 = vmatpush.bf16.msra.mxu0 %v1863
    %1883 = vmatpush.bf16.msra.mxu0 %v1862
    %1884 = vmatpush.bf16.msra.mxu0 %v1861
    %1885 = vmatmul.bf16.gmra.mxu0 %v1806
    %v1886 = vpop.f32.mrf.mxu0
    %v1887 = vadd.f32 %v1827, %v1886
    %v1888 = vpop.f32.mrf.mxu0
    %1889 = vdwg.mxu0
    %v1890 = vxor.u32 %v1887, 2147483648
    %v1891 = vmul.f32 %v1890, 1.442695
    %v1892 = vpow.pop %v1891
    %v1893 = vadd.f32 %v1892, 1.0
    %v1894 = vrcp.pop %v1893
    %v1895 = vmul.f32 %v1893, %v1894
    %v1896 = vsub.f32 1.0, %v1895
    %v1897 = vmul.f32 %v1894, %v1896
    %v1898 = vadd.f32 %v1894, %v1897
    %vm1899 = vweird.f32 %v1893
    %vm1900 = vweird.f32 %v1894
    %vm1901 = vmor %vm1899, %vm1900
    %v1902 = vsel %vm1901, %v1894, %v1898
    %v1903 = vand.u32 2147483647, %v1893
    %vm1904 = vcmp.eq.f32.partialorder %v1903, 8.507059e+37
    %v1905 = vand.u32 %v1893, 2147483648
    %v1906 = vor.u32 1.1754944e-38, %v1905
    %v1907 = vsel %vm1904, %v1906, %v1902
    %v1908 = vmul.f32 1.0, %v1907
    %v1909 = vmul.f32 %v1887, %v1908
    %v1910 = vpack.c.bf16 %v1909, %v1909
    %s1911 = scalar_lea.vmem [#allocation14], 64
    %v1912 = vld [vmem:[%s1911] sm:$0xf]
    %v1913 = vld [vmem:[%s1911 + $0x4] sm:$0xf]
    %v1914 = vld [vmem:[%s1911 + $0x8] sm:$0xf]
    %v1915 = vld [vmem:[%s1911 + $0xc] sm:$0xf]
    %v1916 = vld [vmem:[%s1911 + $0x10] sm:$0xf]
    %v1917 = vld [vmem:[%s1911 + $0x14] sm:$0xf]
    %v1918 = vld [vmem:[%s1911 + $0x18] sm:$0xf]
    %v1919 = vld [vmem:[%s1911 + $0x1c] sm:$0xf]
    %v1920 = vld [vmem:[%s1911 + $0x20] sm:$0xf]
    %v1921 = vld [vmem:[%s1911 + $0x24] sm:$0xf]
    %v1922 = vld [vmem:[%s1911 + $0x28] sm:$0xf]
    %v1923 = vld [vmem:[%s1911 + $0x2c] sm:$0xf]
    %v1924 = vld [vmem:[%s1911 + $0x30] sm:$0xf]
    %v1925 = vld [vmem:[%s1911 + $0x34] sm:$0xf]
    %v1926 = vld [vmem:[%s1911 + $0x38] sm:$0xf]
    %v1927 = vld [vmem:[%s1911 + $0x3c] sm:$0xf]
    %s1928 = scalar_lea.vmem %s9, 1
    %v1929 = vld [vmem:[%s1928] sm:$0x1]
    %v1931 = vperm.slane %v1929, 0
    %v1949 = vunpack.c.l.b16 %v1912
    %v1950 = vunpack.c.l.b16 %v1913
    %v1951 = vunpack.c.l.b16 %v1914
    %v1952 = vunpack.c.l.b16 %v1915
    %v1953 = vunpack.c.l.b16 %v1916
    %v1954 = vunpack.c.l.b16 %v1917
    %v1955 = vunpack.c.l.b16 %v1918
    %v1956 = vunpack.c.l.b16 %v1919
    %v1957 = vunpack.c.l.b16 %v1920
    %v1958 = vunpack.c.l.b16 %v1921
    %v1959 = vunpack.c.l.b16 %v1922
    %v1960 = vunpack.c.l.b16 %v1923
    %v1961 = vunpack.c.l.b16 %v1924
    %v1962 = vunpack.c.l.b16 %v1925
    %v1963 = vunpack.c.l.b16 %v1926
    %v1964 = vunpack.c.l.b16 %v1927
    %v1965 = vpack.c.b16 %v1950, %v1949
    %v1966 = vpack.c.b16 %v1952, %v1951
    %v1967 = vpack.c.b16 %v1954, %v1953
    %v1968 = vpack.c.b16 %v1956, %v1955
    %v1969 = vpack.c.b16 %v1958, %v1957
    %v1970 = vpack.c.b16 %v1960, %v1959
    %v1971 = vpack.c.b16 %v1962, %v1961
    %v1972 = vpack.c.b16 %v1964, %v1963
    %1981 = vmatpush.bf16.msra.mxu0 %v1972
    %1982 = vmatpush.bf16.msra.mxu0 %v1971
    %1983 = vmatpush.bf16.msra.mxu0 %v1970
    %1984 = vmatpush.bf16.msra.mxu0 %v1969
    %1985 = vmatpush.bf16.msra.mxu0 %v1968
    %1986 = vmatpush.bf16.msra.mxu0 %v1967
    %1987 = vmatpush.bf16.msra.mxu0 %v1966
    %1988 = vmatpush.bf16.msra.mxu0 %v1965
    %1989 = vmatmul.bf16.gmra.mxu0 %v1910
    %v1990 = vpop.f32.mrf.mxu0
    %v1991 = vadd.f32 %v1931, %v1990
    %v1992 = vpop.f32.mrf.mxu0
    %1993 = vdwg.mxu0
    %v1994 = vmul.f32 %v1991, %v859
    %v1995 = vmul.f32 %v1994, 0.25
    %v1996 = vadd.f32 %v1995, %v1783
    %1997 = vadd.xlane.f32.xlu0 %v1996
    %v1998 = vpop.xlane.xlu0 %1997
    %v1999 = vmul.f32 %v1998, %v1576
    %v2000 = vsub.f32 %v1996, %v1999
    %v2001 = vmul.f32 %v2000, %v2000
    %2002 = vadd.xlane.f32.xlu0 %v2001
    %v2003 = vpop.xlane.xlu0 %2002
    %v2004 = vmul.f32 %v2003, %v1576
    %v2005 = vadd.f32 %v2004, 1e-05
    %v2006 = vrsqrt.pop %v2005
    %v2007 = vmul.f32 %v2006, %v2005
    %v2008 = vmul.f32 %v2007, %v2006
    %v2009 = vmul.f32 0.5, %v2008
    %v2010 = vsub.f32 1.5, %v2009
    %v2011 = vmul.f32 %v2006, %v2010
    %vm2012 = vweird.f32 %v2005
    %vm2013 = vweird.f32 %v2006
    %vm2014 = vmor %vm2012, %vm2013
    %v2015 = vsel %vm2014, %v2006, %v2011
    %v2016 = vmul.f32 %v2000, %v2015
    %v2017 = vmul.f32 %v1046, %v2016
    %v2018 = vadd.f32 %v2017, %v1129
    %v2019 = vpack.c.bf16 %v2018, %v2018
    %s2020 = scalar_lea.vmem [#allocation13], 128
    %v2021 = vld [vmem:[%s2020] sm:$0xf]
    %v2022 = vld [vmem:[%s2020 + $0x4] sm:$0xf]
    %v2023 = vld [vmem:[%s2020 + $0x8] sm:$0xf]
    %v2024 = vld [vmem:[%s2020 + $0xc] sm:$0xf]
    %v2025 = vld [vmem:[%s2020 + $0x10] sm:$0xf]
    %v2026 = vld [vmem:[%s2020 + $0x14] sm:$0xf]
    %v2027 = vld [vmem:[%s2020 + $0x18] sm:$0xf]
    %v2028 = vld [vmem:[%s2020 + $0x1c] sm:$0xf]
    %v2029 = vld [vmem:[%s2020 + $0x20] sm:$0xf]
    %v2030 = vld [vmem:[%s2020 + $0x24] sm:$0xf]
    %v2031 = vld [vmem:[%s2020 + $0x28] sm:$0xf]
    %v2032 = vld [vmem:[%s2020 + $0x2c] sm:$0xf]
    %v2033 = vld [vmem:[%s2020 + $0x30] sm:$0xf]
    %v2034 = vld [vmem:[%s2020 + $0x34] sm:$0xf]
    %v2035 = vld [vmem:[%s2020 + $0x38] sm:$0xf]
    %v2036 = vld [vmem:[%s2020 + $0x3c] sm:$0xf]
    %s2037 = scalar_lea.vmem %s7, 2
    %v2038 = vld [vmem:[%s2037] sm:$0x1]
    %v2040 = vperm.slane %v2038, 0
    %v2058 = vunpack.c.l.b16 %v2021
    %v2059 = vunpack.c.l.b16 %v2022
    %v2060 = vunpack.c.l.b16 %v2023
    %v2061 = vunpack.c.l.b16 %v2024
    %v2062 = vunpack.c.l.b16 %v2025
    %v2063 = vunpack.c.l.b16 %v2026
    %v2064 = vunpack.c.l.b16 %v2027
    %v2065 = vunpack.c.l.b16 %v2028
    %v2066 = vunpack.c.l.b16 %v2029
    %v2067 = vunpack.c.l.b16 %v2030
    %v2068 = vunpack.c.l.b16 %v2031
    %v2069 = vunpack.c.l.b16 %v2032
    %v2070 = vunpack.c.l.b16 %v2033
    %v2071 = vunpack.c.l.b16 %v2034
    %v2072 = vunpack.c.l.b16 %v2035
    %v2073 = vunpack.c.l.b16 %v2036
    %v2074 = vpack.c.b16 %v2059, %v2058
    %v2075 = vpack.c.b16 %v2061, %v2060
    %v2076 = vpack.c.b16 %v2063, %v2062
    %v2077 = vpack.c.b16 %v2065, %v2064
    %v2078 = vpack.c.b16 %v2067, %v2066
    %v2079 = vpack.c.b16 %v2069, %v2068
    %v2080 = vpack.c.b16 %v2071, %v2070
    %v2081 = vpack.c.b16 %v2073, %v2072
    %2090 = vmatpush.bf16.msra.mxu0 %v2081
    %2091 = vmatpush.bf16.msra.mxu0 %v2080
    %2092 = vmatpush.bf16.msra.mxu0 %v2079
    %2093 = vmatpush.bf16.msra.mxu0 %v2078
    %2094 = vmatpush.bf16.msra.mxu0 %v2077
    %2095 = vmatpush.bf16.msra.mxu0 %v2076
    %2096 = vmatpush.bf16.msra.mxu0 %v2075
    %2097 = vmatpush.bf16.msra.mxu0 %v2074
    %2098 = vmatmul.bf16.gmra.mxu0 %v2019
    %v2099 = vpop.f32.mrf.mxu0
    %v2100 = vadd.f32 %v2040, %v2099
    %v2101 = vpop.f32.mrf.mxu0
    %2102 = vdwg.mxu0
    %v2103 = vxor.u32 %v2100, 2147483648
    %v2104 = vmul.f32 %v2103, 1.442695
    %v2105 = vpow.pop %v2104
    %v2106 = vadd.f32 %v2105, 1.0
    %v2107 = vrcp.pop %v2106
    %v2108 = vmul.f32 %v2106, %v2107
    %v2109 = vsub.f32 1.0, %v2108
    %v2110 = vmul.f32 %v2107, %v2109
    %v2111 = vadd.f32 %v2107, %v2110
    %vm2112 = vweird.f32 %v2106
    %vm2113 = vweird.f32 %v2107
    %vm2114 = vmor %vm2112, %vm2113
    %v2115 = vsel %vm2114, %v2107, %v2111
    %v2116 = vand.u32 2147483647, %v2106
    %vm2117 = vcmp.eq.f32.partialorder %v2116, 8.507059e+37
    %v2118 = vand.u32 %v2106, 2147483648
    %v2119 = vor.u32 1.1754944e-38, %v2118
    %v2120 = vsel %vm2117, %v2119, %v2115
    %v2121 = vmul.f32 1.0, %v2120
    %v2122 = vmul.f32 %v2100, %v2121
    %v2123 = vpack.c.bf16 %v2122, %v2122
    %s2124 = scalar_lea.vmem [#allocation14], 128
    %v2125 = vld [vmem:[%s2124] sm:$0xf]
    %v2126 = vld [vmem:[%s2124 + $0x4] sm:$0xf]
    %v2127 = vld [vmem:[%s2124 + $0x8] sm:$0xf]
    %v2128 = vld [vmem:[%s2124 + $0xc] sm:$0xf]
    %v2129 = vld [vmem:[%s2124 + $0x10] sm:$0xf]
    %v2130 = vld [vmem:[%s2124 + $0x14] sm:$0xf]
    %v2131 = vld [vmem:[%s2124 + $0x18] sm:$0xf]
    %v2132 = vld [vmem:[%s2124 + $0x1c] sm:$0xf]
    %v2133 = vld [vmem:[%s2124 + $0x20] sm:$0xf]
    %v2134 = vld [vmem:[%s2124 + $0x24] sm:$0xf]
    %v2135 = vld [vmem:[%s2124 + $0x28] sm:$0xf]
    %v2136 = vld [vmem:[%s2124 + $0x2c] sm:$0xf]
    %v2137 = vld [vmem:[%s2124 + $0x30] sm:$0xf]
    %v2138 = vld [vmem:[%s2124 + $0x34] sm:$0xf]
    %v2139 = vld [vmem:[%s2124 + $0x38] sm:$0xf]
    %v2140 = vld [vmem:[%s2124 + $0x3c] sm:$0xf]
    %s2141 = scalar_lea.vmem %s9, 2
    %v2142 = vld [vmem:[%s2141] sm:$0x1]
    %v2144 = vperm.slane %v2142, 0
    %v2162 = vunpack.c.l.b16 %v2125
    %v2163 = vunpack.c.l.b16 %v2126
    %v2164 = vunpack.c.l.b16 %v2127
    %v2165 = vunpack.c.l.b16 %v2128
    %v2166 = vunpack.c.l.b16 %v2129
    %v2167 = vunpack.c.l.b16 %v2130
    %v2168 = vunpack.c.l.b16 %v2131
    %v2169 = vunpack.c.l.b16 %v2132
    %v2170 = vunpack.c.l.b16 %v2133
    %v2171 = vunpack.c.l.b16 %v2134
    %v2172 = vunpack.c.l.b16 %v2135
    %v2173 = vunpack.c.l.b16 %v2136
    %v2174 = vunpack.c.l.b16 %v2137
    %v2175 = vunpack.c.l.b16 %v2138
    %v2176 = vunpack.c.l.b16 %v2139
    %v2177 = vunpack.c.l.b16 %v2140
    %v2178 = vpack.c.b16 %v2163, %v2162
    %v2179 = vpack.c.b16 %v2165, %v2164
    %v2180 = vpack.c.b16 %v2167, %v2166
    %v2181 = vpack.c.b16 %v2169, %v2168
    %v2182 = vpack.c.b16 %v2171, %v2170
    %v2183 = vpack.c.b16 %v2173, %v2172
    %v2184 = vpack.c.b16 %v2175, %v2174
    %v2185 = vpack.c.b16 %v2177, %v2176
    %2194 = vmatpush.bf16.msra.mxu0 %v2185
    %2195 = vmatpush.bf16.msra.mxu0 %v2184
    %2196 = vmatpush.bf16.msra.mxu0 %v2183
    %2197 = vmatpush.bf16.msra.mxu0 %v2182
    %2198 = vmatpush.bf16.msra.mxu0 %v2181
    %2199 = vmatpush.bf16.msra.mxu0 %v2180
    %2200 = vmatpush.bf16.msra.mxu0 %v2179
    %2201 = vmatpush.bf16.msra.mxu0 %v2178
    %2202 = vmatmul.bf16.gmra.mxu0 %v2123
    %v2203 = vpop.f32.mrf.mxu0
    %v2204 = vadd.f32 %v2144, %v2203
    %v2205 = vpop.f32.mrf.mxu0
    %2206 = vdwg.mxu0
    %v2207 = vmul.f32 %v2204, %v1212
    %v2208 = vmul.f32 %v2207, 0.25
    %v2209 = vadd.f32 %v2208, %v1996
    %2210 = vadd.xlane.f32.xlu0 %v2209
    %v2211 = vpop.xlane.xlu0 %2210
    %v2212 = vmul.f32 %v2211, %v1576
    %v2213 = vsub.f32 %v2209, %v2212
    %v2214 = vmul.f32 %v2213, %v2213
    %2215 = vadd.xlane.f32.xlu0 %v2214
    %v2216 = vpop.xlane.xlu0 %2215
    %v2217 = vmul.f32 %v2216, %v1576
    %v2218 = vadd.f32 %v2217, 1e-05
    %v2219 = vrsqrt.pop %v2218
    %v2220 = vmul.f32 %v2219, %v2218
    %v2221 = vmul.f32 %v2220, %v2219
    %v2222 = vmul.f32 0.5, %v2221
    %v2223 = vsub.f32 1.5, %v2222
    %v2224 = vmul.f32 %v2219, %v2223
    %vm2225 = vweird.f32 %v2218
    %vm2226 = vweird.f32 %v2219
    %vm2227 = vmor %vm2225, %vm2226
    %v2228 = vsel %vm2227, %v2219, %v2224
    %v2229 = vmul.f32 %v2213, %v2228
    %v2230 = vmul.f32 %v1399, %v2229
    %v2231 = vadd.f32 %v2230, %v1482
    %v2232 = vpack.c.bf16 %v2231, %v2231
    %s2233 = scalar_lea.vmem [#allocation13], 192
    %v2234 = vld [vmem:[%s2233] sm:$0xf]
    %v2235 = vld [vmem:[%s2233 + $0x4] sm:$0xf]
    %v2236 = vld [vmem:[%s2233 + $0x8] sm:$0xf]
    %v2237 = vld [vmem:[%s2233 + $0xc] sm:$0xf]
    %v2238 = vld [vmem:[%s2233 + $0x10] sm:$0xf]
    %v2239 = vld [vmem:[%s2233 + $0x14] sm:$0xf]
    %v2240 = vld [vmem:[%s2233 + $0x18] sm:$0xf]
    %v2241 = vld [vmem:[%s2233 + $0x1c] sm:$0xf]
    %v2242 = vld [vmem:[%s2233 + $0x20] sm:$0xf]
    %v2243 = vld [vmem:[%s2233 + $0x24] sm:$0xf]
    %v2244 = vld [vmem:[%s2233 + $0x28] sm:$0xf]
    %v2245 = vld [vmem:[%s2233 + $0x2c] sm:$0xf]
    %v2246 = vld [vmem:[%s2233 + $0x30] sm:$0xf]
    %v2247 = vld [vmem:[%s2233 + $0x34] sm:$0xf]
    %v2248 = vld [vmem:[%s2233 + $0x38] sm:$0xf]
    %v2249 = vld [vmem:[%s2233 + $0x3c] sm:$0xf]
    %s2250 = scalar_lea.vmem %s7, 3
    %v2251 = vld [vmem:[%s2250] sm:$0x1]
    %v2253 = vperm.slane %v2251, 0
    %v2271 = vunpack.c.l.b16 %v2234
    %v2272 = vunpack.c.l.b16 %v2235
    %v2273 = vunpack.c.l.b16 %v2236
    %v2274 = vunpack.c.l.b16 %v2237
    %v2275 = vunpack.c.l.b16 %v2238
    %v2276 = vunpack.c.l.b16 %v2239
    %v2277 = vunpack.c.l.b16 %v2240
    %v2278 = vunpack.c.l.b16 %v2241
    %v2279 = vunpack.c.l.b16 %v2242
    %v2280 = vunpack.c.l.b16 %v2243
    %v2281 = vunpack.c.l.b16 %v2244
    %v2282 = vunpack.c.l.b16 %v2245
    %v2283 = vunpack.c.l.b16 %v2246
    %v2284 = vunpack.c.l.b16 %v2247
    %v2285 = vunpack.c.l.b16 %v2248
    %v2286 = vunpack.c.l.b16 %v2249
    %v2287 = vpack.c.b16 %v2272, %v2271
    %v2288 = vpack.c.b16 %v2274, %v2273
    %v2289 = vpack.c.b16 %v2276, %v2275
    %v2290 = vpack.c.b16 %v2278, %v2277
    %v2291 = vpack.c.b16 %v2280, %v2279
    %v2292 = vpack.c.b16 %v2282, %v2281
    %v2293 = vpack.c.b16 %v2284, %v2283
    %v2294 = vpack.c.b16 %v2286, %v2285
    %2303 = vmatpush.bf16.msra.mxu0 %v2294
    %2304 = vmatpush.bf16.msra.mxu0 %v2293
    %2305 = vmatpush.bf16.msra.mxu0 %v2292
    %2306 = vmatpush.bf16.msra.mxu0 %v2291
    %2307 = vmatpush.bf16.msra.mxu0 %v2290
    %2308 = vmatpush.bf16.msra.mxu0 %v2289
    %2309 = vmatpush.bf16.msra.mxu0 %v2288
    %2310 = vmatpush.bf16.msra.mxu0 %v2287
    %2311 = vmatmul.bf16.gmra.mxu0 %v2232
    %v2312 = vpop.f32.mrf.mxu0
    %v2313 = vadd.f32 %v2253, %v2312
    %v2314 = vpop.f32.mrf.mxu0
    %2315 = vdwg.mxu0
    %v2316 = vxor.u32 %v2313, 2147483648
    %v2317 = vmul.f32 %v2316, 1.442695
    %v2318 = vpow.pop %v2317
    %v2319 = vadd.f32 %v2318, 1.0
    %v2320 = vrcp.pop %v2319
    %v2321 = vmul.f32 %v2319, %v2320
    %v2322 = vsub.f32 1.0, %v2321
    %v2323 = vmul.f32 %v2320, %v2322
    %v2324 = vadd.f32 %v2320, %v2323
    %vm2325 = vweird.f32 %v2319
    %vm2326 = vweird.f32 %v2320
    %vm2327 = vmor %vm2325, %vm2326
    %v2328 = vsel %vm2327, %v2320, %v2324
    %v2329 = vand.u32 2147483647, %v2319
    %vm2330 = vcmp.eq.f32.partialorder %v2329, 8.507059e+37
    %v2331 = vand.u32 %v2319, 2147483648
    %v2332 = vor.u32 1.1754944e-38, %v2331
    %v2333 = vsel %vm2330, %v2332, %v2328
    %v2334 = vmul.f32 1.0, %v2333
    %v2335 = vmul.f32 %v2313, %v2334
    %v2336 = vpack.c.bf16 %v2335, %v2335
    %s2337 = scalar_lea.vmem [#allocation14], 192
    %v2338 = vld [vmem:[%s2337] sm:$0xf]
    %v2339 = vld [vmem:[%s2337 + $0x4] sm:$0xf]
    %v2340 = vld [vmem:[%s2337 + $0x8] sm:$0xf]
    %v2341 = vld [vmem:[%s2337 + $0xc] sm:$0xf]
    %v2342 = vld [vmem:[%s2337 + $0x10] sm:$0xf]
    %v2343 = vld [vmem:[%s2337 + $0x14] sm:$0xf]
    %v2344 = vld [vmem:[%s2337 + $0x18] sm:$0xf]
    %v2345 = vld [vmem:[%s2337 + $0x1c] sm:$0xf]
    %v2346 = vld [vmem:[%s2337 + $0x20] sm:$0xf]
    %v2347 = vld [vmem:[%s2337 + $0x24] sm:$0xf]
    %v2348 = vld [vmem:[%s2337 + $0x28] sm:$0xf]
    %v2349 = vld [vmem:[%s2337 + $0x2c] sm:$0xf]
    %v2350 = vld [vmem:[%s2337 + $0x30] sm:$0xf]
    %v2351 = vld [vmem:[%s2337 + $0x34] sm:$0xf]
    %v2352 = vld [vmem:[%s2337 + $0x38] sm:$0xf]
    %v2353 = vld [vmem:[%s2337 + $0x3c] sm:$0xf]
    %s2354 = scalar_lea.vmem %s9, 3
    %v2355 = vld [vmem:[%s2354] sm:$0x1]
    %v2357 = vperm.slane %v2355, 0
    %v2375 = vunpack.c.l.b16 %v2338
    %v2376 = vunpack.c.l.b16 %v2339
    %v2377 = vunpack.c.l.b16 %v2340
    %v2378 = vunpack.c.l.b16 %v2341
    %v2379 = vunpack.c.l.b16 %v2342
    %v2380 = vunpack.c.l.b16 %v2343
    %v2381 = vunpack.c.l.b16 %v2344
    %v2382 = vunpack.c.l.b16 %v2345
    %v2383 = vunpack.c.l.b16 %v2346
    %v2384 = vunpack.c.l.b16 %v2347
    %v2385 = vunpack.c.l.b16 %v2348
    %v2386 = vunpack.c.l.b16 %v2349
    %v2387 = vunpack.c.l.b16 %v2350
    %v2388 = vunpack.c.l.b16 %v2351
    %v2389 = vunpack.c.l.b16 %v2352
    %v2390 = vunpack.c.l.b16 %v2353
    %v2391 = vpack.c.b16 %v2376, %v2375
    %v2392 = vpack.c.b16 %v2378, %v2377
    %v2393 = vpack.c.b16 %v2380, %v2379
    %v2394 = vpack.c.b16 %v2382, %v2381
    %v2395 = vpack.c.b16 %v2384, %v2383
    %v2396 = vpack.c.b16 %v2386, %v2385
    %v2397 = vpack.c.b16 %v2388, %v2387
    %v2398 = vpack.c.b16 %v2390, %v2389
    %2407 = vmatpush.bf16.msra.mxu0 %v2398
    %2408 = vmatpush.bf16.msra.mxu0 %v2397
    %2409 = vmatpush.bf16.msra.mxu0 %v2396
    %2410 = vmatpush.bf16.msra.mxu0 %v2395
    %2411 = vmatpush.bf16.msra.mxu0 %v2394
    %2412 = vmatpush.bf16.msra.mxu0 %v2393
    %2413 = vmatpush.bf16.msra.mxu0 %v2392
    %2414 = vmatpush.bf16.msra.mxu0 %v2391
    %2415 = vmatmul.bf16.gmra.mxu0 %v2336
    %v2416 = vpop.f32.mrf.mxu0
    %v2417 = vadd.f32 %v2357, %v2416
    %v2418 = vpop.f32.mrf.mxu0
    %2419 = vdwg.mxu0
    %v2420 = vmul.f32 %v2417, %v1565
    %v2421 = vmul.f32 %v2420, 0.25
    %v2422 = vadd.f32 %v2421, %v2209
    %2423 = vst [vmem:[#allocation16] sm:$0xff] %v2422
    // Predicated region
    $region74: #{tpu_custom_call.1} parent=1 // pred_check
      _
    $region75: #{tpu_custom_call.1} parent=1 // pred_check_branch
      %2425 = sbr.rel (0) target = $region77
    $region76: #{tpu_custom_call.1} parent=1 // pred_region
      %2427 = vsyncadd [#allocation4], 0
      %s2429 = sshll.u32 [#allocation16], 4
      %s2430 = int_to_ptr.vmem [resolvable:$true] %s2429
      %s2431 = sshll.u32 %s10, 4
      %s2432 = int_to_ptr.hbm [resolvable:$true] %s2431
      %2434 = dma.vmem_to_hbm [thread:$0]  %s2430, 128, %s2432, [#allocation4]
    $region77: #{tpu_custom_call.1} parent=1 // pred_fallthru
      _
    // Predicated region
    $region78: #{tpu_custom_call.1} parent=1 // pred_check
      _
    $region79: #{tpu_custom_call.1} parent=1 // pred_check_branch
      %2436 = sbr.rel (0) target = $region81
    $region80: #{tpu_custom_call.1} parent=1 // pred_region
      %2438 = dma.done [#allocation4], 128
    $region81: #{tpu_custom_call.1} parent=1 // pred_fallthru
      _
    %2439 = vsyncpa [#allocation3], 1
    %2440 = vsyncpa [#allocation6], 1
    %2441 = vsyncpa [#allocation9], 1
    %2442 = vsyncpa [#allocation12], 1
    %2443 = vsyncpa [#allocation15], 1
    %2444 = vsyncpa [#allocation4], 1

</llo_original>
